<compile_context>
chip_gen: v5e
topology: v5e:2x2
jax: 0.10.0
libtpu: 0.0.40
codegen_flags: <defaults>
</compile_context>

<pallas_src>
import functools

import jax
import jax.numpy as jnp
from jax.experimental import pallas as pl
from jax.experimental.pallas import tpu as pltpu


_LANES = 128                    # padded logits width (lane-dense stores)
_ROW_CAP = 512                  # cap on Bt*S -> flat score tile <= 512x512
_VMEM_BUDGET = 40 * 2 ** 20     # conservative vs v7x's 64 MiB physical VMEM
_NEG_KEY = -1e30                # additive bias for masked keys
_NEG_BLOCK = -1e33              # additive bias for cross-batch (off-block) scores


def _round_up(x, m):
    return ((x + m - 1) // m) * m


def _pick_batch_tile(batch, s_pad, *, row_cap=_ROW_CAP):
    """Batch tile so the flattened MXU M-dim (Bt*S) targets ~row_cap rows."""
    bp8 = _round_up(max(batch, 1), 8)
    cap = max(8, (row_cap // max(s_pad, 1)) // 8 * 8)
    bt = min(cap, bp8)
    # v7x has 2 TensorCores: once the batch spans more than one tile of rows,
    # make sure the ("parallel",) batch grid has at least 2 steps to shard.
    if bp8 > 8 and bp8 // bt < 2:
        bt = max(8, (bp8 // 2) // 8 * 8)
    return bt


def _vmem_estimate(bt, s_pad, d, dk, f, lp):
    """Rough VMEM footprint (bytes) used to budget the batch tile."""
    r = bt * s_pad
    tile = bt * s_pad * d * 2 + r * 4 + bt * lp * 4           # lstm / kbias / out
    consts = (d * 2 * dk + d * d + d * f + f * lp) * 2        # bf16 weights
    consts += (2 * dk + 3 * d + f + lp) * 4                   # f32 biases / LN
    consts += r * r * 4 + bt * r * 4 + r * 4                  # bdiag / selmask / qvalid
    interm = r * 2 * dk * 4 + 4 * r * r * 4                   # proj + score temps
    return 2 * tile + consts + interm                         # tiles double-buffered


def _rnn_attn_kernel(lstm_ref, kbias_ref, bdiag_ref, selmask_ref, qvalid_ref,
                     wqk_ref, bqk_ref, wv_ref, bvs_ref, g_ref, beta_ref,
                     w1_ref, b1_ref, wc_ref, bc_ref, out_ref, *, dk, eps):
    """One grid step == one batch tile of Bt elements (flattened to Bt*S rows)."""
    bt, sp, d = lstm_ref.shape
    r = bt * sp
    x = lstm_ref[...].reshape(r, d)                            # bf16 [R, D]

    # Fused q|k projection; the 1/sqrt(max_length) scale is folded into the q
    # columns/bias in the wrapper.  bf16 inputs, f32 accumulate.
    proj = (jnp.dot(x, wqk_ref[...], preferred_element_type=jnp.float32)
            + bqk_ref[...])                                    # f32 [R, 2*dk]
    q = proj[:, :dk]
    k = proj[:, dk:]

    # One dense MXU matmul for every per-batch q.k^T score; cross-batch
    # entries are killed by the additive block-diagonal bias (-1e33), masked
    # keys by the additive key-mask bias (-1e30).  The sentinel ordering makes
    # a fully-masked row degrade to a uniform softmax over its *own* block
    # only (no cross-batch leakage, no NaN).
    s = jax.lax.dot_general(q, k, (((1,), (1,)), ((), ())),
                            preferred_element_type=jnp.float32)  # f32 [R, R]
    s = s + kbias_ref[0] + bdiag_ref[...]

    # Softmax over keys (dim=2 in the torch code), kept in f32; exact per-row
    # normalisation (only R divides).  qvalid zeroes padded query rows so they
    # never contribute to the context sum.
    e = jnp.exp(s - jnp.max(s, axis=-1, keepdims=True))
    l = jnp.sum(e, axis=-1, keepdims=True)                     # >= 1 by construction
    rcp = qvalid_ref[...] / l                                  # [R, 1]

    # feats = sum_q(softmax @ v) == ((sum_q softmax) @ x) @ Wv + S * bv.
    w_cols = jnp.sum(e * rcp, axis=0, keepdims=True)           # [1, R]
    sel = (selmask_ref[...] * w_cols).astype(jnp.bfloat16)     # [Bt, R] block-diag gather
    ctx = jnp.dot(sel, x, preferred_element_type=jnp.float32)  # [Bt, D]
    feats = (jnp.dot(ctx.astype(jnp.bfloat16), wv_ref[...],
                     preferred_element_type=jnp.float32)
             + bvs_ref[...])                                   # [Bt, D]

    # LayerNorm over the feature dim (f32, eps matches nn.LayerNorm default).
    mu = jnp.mean(feats, axis=-1, keepdims=True)
    var = jnp.mean((feats - mu) ** 2, axis=-1, keepdims=True)
    normed = (feats - mu) * jax.lax.rsqrt(var + eps) * g_ref[...] + beta_ref[...]

    # fc1 (Linear + ReLU) and classifier; dropout is identity at inference.
    h = jnp.dot(normed.astype(jnp.bfloat16), w1_ref[...],
                preferred_element_type=jnp.float32) + b1_ref[...]
    h = jnp.maximum(h, 0.0)                                    # [Bt, F]
    out_ref[...] = (jnp.dot(h.astype(jnp.bfloat16), wc_ref[...],
                            preferred_element_type=jnp.float32)
                    + bc_ref[...])                             # [Bt, 128]


def rnn_attn_forward(lstm_out, attention_mask, params, *, max_length):
    """lstm_out: [B, S, D] f32, attention_mask: [B, S] (1/0)."""
    B, S, D = lstm_out.shape
    dk = params["wq"].shape[1]
    F = params["w1"].shape[1]
    L = params["wc"].shape[1]
    LP = _LANES
    eps = 1e-5
    scale = 1.0 / float(max_length) ** 0.5

    # Seq padded to a sublane multiple; batch tile from the row-cap target,
    # shrunk until it fits the v7x-safe VMEM budget.
    s_pad = _round_up(S, 8)
    bt = _pick_batch_tile(B, s_pad)
    while bt > 8 and _vmem_estimate(bt, s_pad, D, dk, F, LP) > _VMEM_BUDGET:
        bt = max(8, (bt // 2) // 8 * 8)
    bp = _round_up(max(_round_up(B, 8), bt), bt)
    gp = bp // bt
    R = bt * s_pad
    est = _vmem_estimate(bt, s_pad, D, dk, F, LP)
    vmem_limit = int(min(48 * 2 ** 20, max(16 * 2 ** 20, 2 * est)))

    # Fused q|k weights (attn scale folded into q); bf16 matmul weights,
    # f32 biases.  Wv handled separately via the (w@x)@Wv identity, with the
    # v bias pre-scaled by S (each softmax row sums to 1, S query rows summed).
    wqk = jnp.concatenate([params["wq"] * scale, params["wk"]],
                          axis=1).astype(jnp.bfloat16)          # [D, 2dk]
    bqk = jnp.concatenate([params["bq"] * scale, params["bk"]],
                          axis=1).astype(jnp.float32)           # [1, 2dk]
    wv = params["wv"].astype(jnp.bfloat16)                      # [D, D]
    bvs = (params["bv"] * float(S)).astype(jnp.float32)         # [1, D]
    ln_g = params["ln_g"].astype(jnp.float32)
    ln_b = params["ln_b"].astype(jnp.float32)
    w1 = params["w1"].astype(jnp.bfloat16)
    b1 = params["b1"].astype(jnp.float32)
    wc_pad = (jnp.zeros((F, LP), jnp.float32)
              .at[:, :L].set(params["wc"]).astype(jnp.bfloat16))
    bc_pad = jnp.zeros((1, LP), jnp.float32).at[:, :L].set(params["bc"])

    # Batch/seq padding; padded rows carry an all-masked key bias (and, for
    # seq padding, a zero query-validity flag) and are sliced off afterwards.
    lstm_p = jnp.pad(lstm_out, ((0, bp - B), (0, s_pad - S), (0, 0))
                     ).astype(jnp.bfloat16)
    mask_p = jnp.pad(attention_mask.astype(jnp.float32),
                     ((0, bp - B), (0, s_pad - S)))
    kbias = ((mask_p - 1.0) * (-_NEG_KEY)).reshape(gp, 1, R)    # 0 / -1e30

    # Grid-constant helpers: block-diagonal additive mask, per-batch column
    # selector for the context matmul, query-row validity flags.
    blk = jnp.arange(R, dtype=jnp.int32) // s_pad
    bdiag = jnp.where(blk[:, None] == blk[None, :], 0.0, _NEG_BLOCK
                      ).astype(jnp.float32)                     # [R, R]
    selmask = (jnp.arange(bt, dtype=jnp.int32)[:, None] == blk[None, :]
               ).astype(jnp.float32)                            # [Bt, R]
    qvalid = ((jnp.arange(R, dtype=jnp.int32) % s_pad) < S
              ).astype(jnp.float32)[:, None]                    # [R, 1]

    args = (lstm_p, kbias, bdiag, selmask, qvalid, wqk, bqk, wv, bvs,
            ln_g, ln_b, w1, b1, wc_pad, bc_pad)

    def build(single_buffer_weights):
        def const(shape):
            idx = lambda *_: (0,) * len(shape)
            if single_buffer_weights:
                # Grid-constant operands: no point double-buffering them.
                return pl.BlockSpec(shape, idx, pipeline_mode=pl.Buffered(1))
            return pl.BlockSpec(shape, idx)

        return pl.pallas_call(
            functools.partial(_rnn_attn_kernel, dk=dk, eps=eps),
            out_shape=jax.ShapeDtypeStruct((bp, LP), jnp.float32),
            grid=(gp,),
            in_specs=[
                pl.BlockSpec((bt, s_pad, D), lambda b: (b, 0, 0)),  # lstm tile
                pl.BlockSpec((1, 1, R), lambda b: (b, 0, 0)),       # key-mask bias
                const((R, R)), const((bt, R)), const((R, 1)),       # bdiag/sel/qvalid
                const((D, 2 * dk)), const((1, 2 * dk)),             # fused w_q|k
                const((D, D)), const((1, D)),                       # w_v, S*b_v
                const((1, D)), const((1, D)),                       # LayerNorm g / b
                const((D, F)), const((1, F)),                       # fc1
                const((F, LP)), const((1, LP)),                     # classifier (padded)
            ],
            out_specs=pl.BlockSpec((bt, LP), lambda b: (b, 0)),
            compiler_params=pltpu.CompilerParams(
                dimension_semantics=("parallel",),
                vmem_limit_bytes=vmem_limit),
        )

    try:
        out = build(True)(*args)
    except Exception:  # pragma: no cover - jax without Buffered(1) support
        out = build(False)(*args)
    return out[:B, :L]


def _reference(lstm_out, attention_mask, params, *, max_length):
    """Pure-JAX f32 reference mirroring the torch forward (eval mode)."""
    q = lstm_out @ params["wq"] + params["bq"]
    k = lstm_out @ params["wk"] + params["bk"]
    v = lstm_out @ params["wv"] + params["bv"]
    attn = jnp.einsum("bqe,bke->bqk", q, k) / float(max_length) ** 0.5
    m = attention_mask.astype(jnp.float32)[:, None, :]
    attn = jnp.where(m == 0.0, -jnp.inf, attn)
    attn = jax.nn.softmax(attn, axis=2)
    feats = jnp.einsum("bqk,bkd->bqd", attn, v).sum(axis=1)
    mu = feats.mean(-1, keepdims=True)
    var = ((feats - mu) ** 2).mean(-1, keepdims=True)
    feats = (feats - mu) / jnp.sqrt(var + 1e-5) * params["ln_g"] + params["ln_b"]
    h = jnp.maximum(feats @ params["w1"] + params["b1"], 0.0)
    return h @ params["wc"] + params["bc"]


if __name__ == "__main__":
    # Small config implied by the module:
    #   rnn_hidden=16, bidirectional -> rnn_dim = 32
    #   max_length (= seq len) = 8, forward_size = 64, num_labels = 4
    B, S = 2, 8
    rnn_hidden, bidirect = 16, True
    D = rnn_hidden * 2 if bidirect else rnn_hidden            # rnn_dim = 32
    DK = 128                                                  # w_qs / w_ks out dim
    FWD, NUM_LABELS, MAX_LEN = 64, 4, S

    key = jax.random.PRNGKey(0)
    ks = jax.random.split(key, 12)

    # Deterministic synthetic parameters (weights as [in, out]).
    params = {
        "wq": 0.05 * jax.random.normal(ks[0], (D, DK), jnp.float32),
        "bq": 0.01 * jax.random.normal(ks[1], (1, DK), jnp.float32),
        "wk": 0.05 * jax.random.normal(ks[2], (D, DK), jnp.float32),
        "bk": 0.01 * jax.random.normal(ks[3], (1, DK), jnp.float32),
        "wv": 0.05 * jax.random.normal(ks[4], (D, D), jnp.float32),
        "bv": 0.01 * jax.random.normal(ks[5], (1, D), jnp.float32),
        "ln_g": jnp.ones((1, D), jnp.float32),
        "ln_b": jnp.zeros((1, D), jnp.float32),
        "w1": 0.05 * jax.random.normal(ks[6], (D, FWD), jnp.float32),
        "b1": 0.01 * jax.random.normal(ks[7], (1, FWD), jnp.float32),
        "wc": 0.05 * jax.random.normal(ks[8], (FWD, NUM_LABELS), jnp.float32),
        "bc": 0.01 * jax.random.normal(ks[9], (1, NUM_LABELS), jnp.float32),
    }

    # Synthetic LSTM-output sequence (stands in for bert -> lstm front-end).
    lstm_out = jax.random.normal(ks[10], (B, S, D), jnp.float32)
    # attention_mask: batch 0 fully valid, batch 1 has 2 padded positions.
    attention_mask = jnp.array(
        [[1] * S, [1] * (S - 2) + [0, 0]], dtype=jnp.int32)

    logits = rnn_attn_forward(lstm_out, attention_mask, params,
                              max_length=MAX_LEN)
    logits = jax.block_until_ready(logits)

    ref = _reference(lstm_out, attention_mask, params, max_length=MAX_LEN)
    assert logits.shape == (B, NUM_LABELS)
    # Tolerance covers the bf16 matmul inputs (weights + lstm activations);
    # softmax / LayerNorm / accumulation stay f32 inside the kernel.
    assert bool(jnp.allclose(logits, ref, atol=2e-2, rtol=2e-2)), (logits, ref)

    print("KERNEL_OK")
</pallas_src>

<mosaic_0001>
module attributes {stable_mosaic.version = 11 : i64} {
  func.func @_rnn_attn_kernel(%arg0: i32, %arg1: memref<8x8x32xbf16, #tpu.memory_space<vmem>>, %arg2: memref<1x1x64xf32, #tpu.memory_space<vmem>>, %arg3: memref<64x64xf32, #tpu.memory_space<vmem>>, %arg4: memref<8x64xf32, #tpu.memory_space<vmem>>, %arg5: memref<64x1xf32, #tpu.memory_space<vmem>>, %arg6: memref<32x256xbf16, #tpu.memory_space<vmem>>, %arg7: memref<1x256xf32, #tpu.memory_space<vmem>>, %arg8: memref<32x32xbf16, #tpu.memory_space<vmem>>, %arg9: memref<1x32xf32, #tpu.memory_space<vmem>>, %arg10: memref<1x32xf32, #tpu.memory_space<vmem>>, %arg11: memref<1x32xf32, #tpu.memory_space<vmem>>, %arg12: memref<32x64xbf16, #tpu.memory_space<vmem>>, %arg13: memref<1x64xf32, #tpu.memory_space<vmem>>, %arg14: memref<64x128xbf16, #tpu.memory_space<vmem>>, %arg15: memref<1x128xf32, #tpu.memory_space<vmem>>, %arg16: memref<8x128xf32, #tpu.memory_space<vmem>>) attributes {dimension_semantics = [#tpu.dimension_semantics<parallel>], iteration_bounds = array<i64: 1>, scalar_prefetch = 0 : i64, scratch_operands = 0 : i64, tpu.core_type = #tpu.core_type<tc>, window_params = [{transform_indices = @transform_0, window_bounds = array<i64: 8, 8, 32>}, {transform_indices = @transform_1, window_bounds = array<i64: 1, 1, 64>}, {pipeline_mode = #tpu.pipeline_mode<synchronous>, transform_indices = @transform_2, window_bounds = array<i64: 64, 64>}, {pipeline_mode = #tpu.pipeline_mode<synchronous>, transform_indices = @transform_3, window_bounds = array<i64: 8, 64>}, {pipeline_mode = #tpu.pipeline_mode<synchronous>, transform_indices = @transform_4, window_bounds = array<i64: 64, 1>}, {pipeline_mode = #tpu.pipeline_mode<synchronous>, transform_indices = @transform_5, window_bounds = array<i64: 32, 256>}, {pipeline_mode = #tpu.pipeline_mode<synchronous>, transform_indices = @transform_6, window_bounds = array<i64: 1, 256>}, {pipeline_mode = #tpu.pipeline_mode<synchronous>, transform_indices = @transform_7, window_bounds = array<i64: 32, 32>}, {pipeline_mode = #tpu.pipeline_mode<synchronous>, transform_indices = @transform_8, window_bounds = array<i64: 1, 32>}, {pipeline_mode = #tpu.pipeline_mode<synchronous>, transform_indices = @transform_9, window_bounds = array<i64: 1, 32>}, {pipeline_mode = #tpu.pipeline_mode<synchronous>, transform_indices = @transform_10, window_bounds = array<i64: 1, 32>}, {pipeline_mode = #tpu.pipeline_mode<synchronous>, transform_indices = @transform_11, window_bounds = array<i64: 32, 64>}, {pipeline_mode = #tpu.pipeline_mode<synchronous>, transform_indices = @transform_12, window_bounds = array<i64: 1, 64>}, {pipeline_mode = #tpu.pipeline_mode<synchronous>, transform_indices = @transform_13, window_bounds = array<i64: 64, 128>}, {pipeline_mode = #tpu.pipeline_mode<synchronous>, transform_indices = @transform_14, window_bounds = array<i64: 1, 128>}, {transform_indices = @transform_15, window_bounds = array<i64: 8, 128>}]} {
    %c0 = arith.constant 0 : index
    %c0_0 = arith.constant 0 : index
    %c0_1 = arith.constant 0 : index
    %0 = vector.load %arg1[%c0, %c0_0, %c0_1] : memref<8x8x32xbf16, #tpu.memory_space<vmem>>, vector<8x8x32xbf16>
    %1 = vector.shape_cast %0 : vector<8x8x32xbf16> to vector<64x32xbf16>
    %c0_2 = arith.constant 0 : index
    %c0_3 = arith.constant 0 : index
    %2 = vector.load %arg6[%c0_2, %c0_3] : memref<32x256xbf16, #tpu.memory_space<vmem>>, vector<32x256xbf16>
    %cst = arith.constant dense<0.000000e+00> : vector<64x256xf32>
    %3 = tpu.matmul %1, %2, %cst {dimension_numbers = #tpu.dot_dimension_numbers<[1], [0], [0], [1], [0, 0, 1, 1], [], []>} : vector<64x32xbf16>, vector<32x256xbf16>, vector<64x256xf32> -> vector<64x256xf32>
    %c0_4 = arith.constant 0 : index
    %c0_5 = arith.constant 0 : index
    %4 = vector.load %arg7[%c0_4, %c0_5] : memref<1x256xf32, #tpu.memory_space<vmem>>, vector<1x256xf32>
    %5 = vector.broadcast %4 : vector<1x256xf32> to vector<64x256xf32>
    %6 = arith.addf %3, %5 : vector<64x256xf32>
    %7 = vector.extract_strided_slice %6 {offsets = [0, 0], sizes = [64, 128], strides = [1, 1]} : vector<64x256xf32> to vector<64x128xf32>
    %8 = vector.extract_strided_slice %6 {offsets = [0, 128], sizes = [64, 128], strides = [1, 1]} : vector<64x256xf32> to vector<64x128xf32>
    %cst_6 = arith.constant dense<0.000000e+00> : vector<64x64xf32>
    %9 = tpu.matmul %7, %8, %cst_6 {dimension_numbers = #tpu.dot_dimension_numbers<[1], [1], [0], [0], [0, 0, 1, 0], [], []>} : vector<64x128xf32>, vector<64x128xf32>, vector<64x64xf32> -> vector<64x64xf32>
    %c0_7 = arith.constant 0 : index
    %c0_8 = arith.constant 0 : index
    %c0_9 = arith.constant 0 : index
    %10 = vector.load %arg2[%c0_7, %c0_8, %c0_9] : memref<1x1x64xf32, #tpu.memory_space<vmem>>, vector<1x1x64xf32>
    %11 = vector.shape_cast %10 : vector<1x1x64xf32> to vector<1x64xf32>
    %12 = vector.broadcast %11 : vector<1x64xf32> to vector<64x64xf32>
    %13 = arith.addf %9, %12 : vector<64x64xf32>
    %c0_10 = arith.constant 0 : index
    %c0_11 = arith.constant 0 : index
    %14 = vector.load %arg3[%c0_10, %c0_11] : memref<64x64xf32, #tpu.memory_space<vmem>>, vector<64x64xf32>
    %15 = arith.addf %13, %14 : vector<64x64xf32>
    %cst_12 = arith.constant dense<0xFF800000> : vector<64xf32>
    %16 = vector.multi_reduction <maximumf>, %15, %cst_12 [1] : vector<64x64xf32> to vector<64xf32>
    %17 = vector.shape_cast %16 : vector<64xf32> to vector<64x1xf32>
    %18 = vector.broadcast %17 : vector<64x1xf32> to vector<64x64xf32>
    %19 = arith.subf %15, %18 : vector<64x64xf32>
    %20 = math.exp %19 : vector<64x64xf32>
    %cst_13 = arith.constant dense<0.000000e+00> : vector<64xf32>
    %21 = vector.multi_reduction <add>, %20, %cst_13 [1] : vector<64x64xf32> to vector<64xf32>
    %22 = vector.shape_cast %21 : vector<64xf32> to vector<64x1xf32>
    %c0_14 = arith.constant 0 : index
    %c0_15 = arith.constant 0 : index
    %23 = vector.load %arg5[%c0_14, %c0_15] : memref<64x1xf32, #tpu.memory_space<vmem>>, vector<64x1xf32>
    %24 = arith.divf %23, %22 : vector<64x1xf32>
    %25 = vector.broadcast %24 : vector<64x1xf32> to vector<64x64xf32>
    %26 = arith.mulf %20, %25 : vector<64x64xf32>
    %cst_16 = arith.constant dense<0.000000e+00> : vector<64xf32>
    %27 = vector.multi_reduction <add>, %26, %cst_16 [0] : vector<64x64xf32> to vector<64xf32>
    %28 = vector.shape_cast %27 : vector<64xf32> to vector<1x64xf32>
    %c0_17 = arith.constant 0 : index
    %c0_18 = arith.constant 0 : index
    %29 = vector.load %arg4[%c0_17, %c0_18] : memref<8x64xf32, #tpu.memory_space<vmem>>, vector<8x64xf32>
    %30 = vector.broadcast %28 : vector<1x64xf32> to vector<8x64xf32>
    %31 = arith.mulf %29, %30 : vector<8x64xf32>
    %32 = arith.truncf %31 : vector<8x64xf32> to vector<8x64xbf16>
    %cst_19 = arith.constant dense<0.000000e+00> : vector<8x32xf32>
    %33 = tpu.matmul %32, %1, %cst_19 {dimension_numbers = #tpu.dot_dimension_numbers<[1], [0], [0], [1], [0, 0, 1, 1], [], []>} : vector<8x64xbf16>, vector<64x32xbf16>, vector<8x32xf32> -> vector<8x32xf32>
    %34 = arith.truncf %33 : vector<8x32xf32> to vector<8x32xbf16>
    %c0_20 = arith.constant 0 : index
    %c0_21 = arith.constant 0 : index
    %35 = vector.load %arg8[%c0_20, %c0_21] : memref<32x32xbf16, #tpu.memory_space<vmem>>, vector<32x32xbf16>
    %cst_22 = arith.constant dense<0.000000e+00> : vector<8x32xf32>
    %36 = tpu.matmul %34, %35, %cst_22 {dimension_numbers = #tpu.dot_dimension_numbers<[1], [0], [0], [1], [0, 0, 1, 1], [], []>} : vector<8x32xbf16>, vector<32x32xbf16>, vector<8x32xf32> -> vector<8x32xf32>
    %c0_23 = arith.constant 0 : index
    %c0_24 = arith.constant 0 : index
    %37 = vector.load %arg9[%c0_23, %c0_24] : memref<1x32xf32, #tpu.memory_space<vmem>>, vector<1x32xf32>
    %38 = vector.broadcast %37 : vector<1x32xf32> to vector<8x32xf32>
    %39 = arith.addf %36, %38 : vector<8x32xf32>
    %cst_25 = arith.constant dense<0.000000e+00> : vector<8xf32>
    %40 = vector.multi_reduction <add>, %39, %cst_25 [1] : vector<8x32xf32> to vector<8xf32>
    %41 = vector.shape_cast %40 : vector<8xf32> to vector<8x1xf32>
    %cst_26 = arith.constant 3.200000e+01 : f32
    %42 = vector.broadcast %cst_26 : f32 to vector<8x1xf32>
    %43 = arith.divf %41, %42 : vector<8x1xf32>
    %44 = vector.broadcast %43 : vector<8x1xf32> to vector<8x32xf32>
    %45 = arith.subf %39, %44 : vector<8x32xf32>
    %46 = arith.mulf %45, %45 : vector<8x32xf32>
    %cst_27 = arith.constant dense<0.000000e+00> : vector<8xf32>
    %47 = vector.multi_reduction <add>, %46, %cst_27 [1] : vector<8x32xf32> to vector<8xf32>
    %48 = vector.shape_cast %47 : vector<8xf32> to vector<8x1xf32>
    %cst_28 = arith.constant 3.200000e+01 : f32
    %49 = vector.broadcast %cst_28 : f32 to vector<8x1xf32>
    %50 = arith.divf %48, %49 : vector<8x1xf32>
    %51 = vector.broadcast %43 : vector<8x1xf32> to vector<8x32xf32>
    %52 = arith.subf %39, %51 : vector<8x32xf32>
    %cst_29 = arith.constant 9.99999974E-6 : f32
    %53 = vector.broadcast %cst_29 : f32 to vector<8x1xf32>
    %54 = arith.addf %50, %53 : vector<8x1xf32>
    %55 = math.rsqrt %54 : vector<8x1xf32>
    %56 = vector.broadcast %55 : vector<8x1xf32> to vector<8x32xf32>
    %57 = arith.mulf %52, %56 : vector<8x32xf32>
    %c0_30 = arith.constant 0 : index
    %c0_31 = arith.constant 0 : index
    %58 = vector.load %arg10[%c0_30, %c0_31] : memref<1x32xf32, #tpu.memory_space<vmem>>, vector<1x32xf32>
    %59 = vector.broadcast %58 : vector<1x32xf32> to vector<8x32xf32>
    %60 = arith.mulf %57, %59 : vector<8x32xf32>
    %c0_32 = arith.constant 0 : index
    %c0_33 = arith.constant 0 : index
    %61 = vector.load %arg11[%c0_32, %c0_33] : memref<1x32xf32, #tpu.memory_space<vmem>>, vector<1x32xf32>
    %62 = vector.broadcast %61 : vector<1x32xf32> to vector<8x32xf32>
    %63 = arith.addf %60, %62 : vector<8x32xf32>
    %64 = arith.truncf %63 : vector<8x32xf32> to vector<8x32xbf16>
    %c0_34 = arith.constant 0 : index
    %c0_35 = arith.constant 0 : index
    %65 = vector.load %arg12[%c0_34, %c0_35] : memref<32x64xbf16, #tpu.memory_space<vmem>>, vector<32x64xbf16>
    %cst_36 = arith.constant dense<0.000000e+00> : vector<8x64xf32>
    %66 = tpu.matmul %64, %65, %cst_36 {dimension_numbers = #tpu.dot_dimension_numbers<[1], [0], [0], [1], [0, 0, 1, 1], [], []>} : vector<8x32xbf16>, vector<32x64xbf16>, vector<8x64xf32> -> vector<8x64xf32>
    %c0_37 = arith.constant 0 : index
    %c0_38 = arith.constant 0 : index
    %67 = vector.load %arg13[%c0_37, %c0_38] : memref<1x64xf32, #tpu.memory_space<vmem>>, vector<1x64xf32>
    %68 = vector.broadcast %67 : vector<1x64xf32> to vector<8x64xf32>
    %69 = arith.addf %66, %68 : vector<8x64xf32>
    %cst_39 = arith.constant 0.000000e+00 : f32
    %70 = vector.broadcast %cst_39 : f32 to vector<8x64xf32>
    %71 = arith.maximumf %69, %70 : vector<8x64xf32>
    %72 = arith.truncf %71 : vector<8x64xf32> to vector<8x64xbf16>
    %c0_40 = arith.constant 0 : index
    %c0_41 = arith.constant 0 : index
    %73 = vector.load %arg14[%c0_40, %c0_41] : memref<64x128xbf16, #tpu.memory_space<vmem>>, vector<64x128xbf16>
    %cst_42 = arith.constant dense<0.000000e+00> : vector<8x128xf32>
    %74 = tpu.matmul %72, %73, %cst_42 {dimension_numbers = #tpu.dot_dimension_numbers<[1], [0], [0], [1], [0, 0, 1, 1], [], []>} : vector<8x64xbf16>, vector<64x128xbf16>, vector<8x128xf32> -> vector<8x128xf32>
    %c0_43 = arith.constant 0 : index
    %c0_44 = arith.constant 0 : index
    %75 = vector.load %arg15[%c0_43, %c0_44] : memref<1x128xf32, #tpu.memory_space<vmem>>, vector<1x128xf32>
    %76 = vector.broadcast %75 : vector<1x128xf32> to vector<8x128xf32>
    %77 = arith.addf %74, %76 : vector<8x128xf32>
    %c0_45 = arith.constant 0 : index
    %c0_46 = arith.constant 0 : index
    %78 = vector.load %arg16[%c0_45, %c0_46] : memref<8x128xf32, #tpu.memory_space<vmem>>, vector<8x128xf32>
    tpu.vector_store %arg16[%c0_45, %c0_46], %77 {strides = array<i32>} : memref<8x128xf32, #tpu.memory_space<vmem>>, vector<8x128xf32>,
    return
  }
  func.func @transform_0(%arg0: i32) -> (i32, i32, i32) {
    %c0_i32 = arith.constant 0 : i32
    %c0_i32_0 = arith.constant 0 : i32
    %c0_i32_1 = arith.constant 0 : i32
    return %arg0, %c0_i32, %c0_i32_0 : i32, i32, i32
  }
  func.func @transform_1(%arg0: i32) -> (i32, i32, i32) {
    %c0_i32 = arith.constant 0 : i32
    %c0_i32_0 = arith.constant 0 : i32
    %c0_i32_1 = arith.constant 0 : i32
    return %arg0, %c0_i32, %c0_i32_0 : i32, i32, i32
  }
  func.func @transform_2(%arg0: i32) -> (i32, i32) {
    %c0_i32 = arith.constant 0 : i32
    %c0_i32_0 = arith.constant 0 : i32
    %c0_i32_1 = arith.constant 0 : i32
    return %c0_i32, %c0_i32_0 : i32, i32
  }
  func.func @transform_3(%arg0: i32) -> (i32, i32) {
    %c0_i32 = arith.constant 0 : i32
    %c0_i32_0 = arith.constant 0 : i32
    %c0_i32_1 = arith.constant 0 : i32
    return %c0_i32, %c0_i32_0 : i32, i32
  }
  func.func @transform_4(%arg0: i32) -> (i32, i32) {
    %c0_i32 = arith.constant 0 : i32
    %c0_i32_0 = arith.constant 0 : i32
    %c0_i32_1 = arith.constant 0 : i32
    return %c0_i32, %c0_i32_0 : i32, i32
  }
  func.func @transform_5(%arg0: i32) -> (i32, i32) {
    %c0_i32 = arith.constant 0 : i32
    %c0_i32_0 = arith.constant 0 : i32
    %c0_i32_1 = arith.constant 0 : i32
    return %c0_i32, %c0_i32_0 : i32, i32
  }
  func.func @transform_6(%arg0: i32) -> (i32, i32) {
    %c0_i32 = arith.constant 0 : i32
    %c0_i32_0 = arith.constant 0 : i32
    %c0_i32_1 = arith.constant 0 : i32
    return %c0_i32, %c0_i32_0 : i32, i32
  }
  func.func @transform_7(%arg0: i32) -> (i32, i32) {
    %c0_i32 = arith.constant 0 : i32
    %c0_i32_0 = arith.constant 0 : i32
    %c0_i32_1 = arith.constant 0 : i32
    return %c0_i32, %c0_i32_0 : i32, i32
  }
  func.func @transform_8(%arg0: i32) -> (i32, i32) {
    %c0_i32 = arith.constant 0 : i32
    %c0_i32_0 = arith.constant 0 : i32
    %c0_i32_1 = arith.constant 0 : i32
    return %c0_i32, %c0_i32_0 : i32, i32
  }
  func.func @transform_9(%arg0: i32) -> (i32, i32) {
    %c0_i32 = arith.constant 0 : i32
    %c0_i32_0 = arith.constant 0 : i32
    %c0_i32_1 = arith.constant 0 : i32
    return %c0_i32, %c0_i32_0 : i32, i32
  }
  func.func @transform_10(%arg0: i32) -> (i32, i32) {
    %c0_i32 = arith.constant 0 : i32
    %c0_i32_0 = arith.constant 0 : i32
    %c0_i32_1 = arith.constant 0 : i32
    return %c0_i32, %c0_i32_0 : i32, i32
  }
  func.func @transform_11(%arg0: i32) -> (i32, i32) {
    %c0_i32 = arith.constant 0 : i32
    %c0_i32_0 = arith.constant 0 : i32
    %c0_i32_1 = arith.constant 0 : i32
    return %c0_i32, %c0_i32_0 : i32, i32
  }
  func.func @transform_12(%arg0: i32) -> (i32, i32) {
    %c0_i32 = arith.constant 0 : i32
    %c0_i32_0 = arith.constant 0 : i32
    %c0_i32_1 = arith.constant 0 : i32
    return %c0_i32, %c0_i32_0 : i32, i32
  }
  func.func @transform_13(%arg0: i32) -> (i32, i32) {
    %c0_i32 = arith.constant 0 : i32
    %c0_i32_0 = arith.constant 0 : i32
    %c0_i32_1 = arith.constant 0 : i32
    return %c0_i32, %c0_i32_0 : i32, i32
  }
  func.func @transform_14(%arg0: i32) -> (i32, i32) {
    %c0_i32 = arith.constant 0 : i32
    %c0_i32_0 = arith.constant 0 : i32
    %c0_i32_1 = arith.constant 0 : i32
    return %c0_i32, %c0_i32_0 : i32, i32
  }
  func.func @transform_15(%arg0: i32) -> (i32, i32) {
    %c0_i32 = arith.constant 0 : i32
    %c0_i32_0 = arith.constant 0 : i32
    return %arg0, %c0_i32 : i32, i32
  }
}

module attributes {stable_mosaic.version = 11 : i64} {
  func.func @_rnn_attn_kernel(%arg0: i32, %arg1: memref<8x8x32xbf16, #tpu.memory_space<vmem>>, %arg2: memref<1x1x64xf32, #tpu.memory_space<vmem>>, %arg3: memref<64x64xf32, #tpu.memory_space<vmem>>, %arg4: memref<8x64xf32, #tpu.memory_space<vmem>>, %arg5: memref<64x1xf32, #tpu.memory_space<vmem>>, %arg6: memref<32x256xbf16, #tpu.memory_space<vmem>>, %arg7: memref<1x256xf32, #tpu.memory_space<vmem>>, %arg8: memref<32x32xbf16, #tpu.memory_space<vmem>>, %arg9: memref<1x32xf32, #tpu.memory_space<vmem>>, %arg10: memref<1x32xf32, #tpu.memory_space<vmem>>, %arg11: memref<1x32xf32, #tpu.memory_space<vmem>>, %arg12: memref<32x64xbf16, #tpu.memory_space<vmem>>, %arg13: memref<1x64xf32, #tpu.memory_space<vmem>>, %arg14: memref<64x128xbf16, #tpu.memory_space<vmem>>, %arg15: memref<1x128xf32, #tpu.memory_space<vmem>>, %arg16: memref<8x128xf32, #tpu.memory_space<vmem>>) attributes {dimension_semantics = [#tpu.dimension_semantics<parallel>], iteration_bounds = array<i64: 1>, scalar_prefetch = 0 : i64, scratch_operands = 0 : i64, tpu.core_type = #tpu.core_type<tc>, window_params = [{transform_indices = @transform_0, window_bounds = array<i64: 8, 8, 32>}, {transform_indices = @transform_1, window_bounds = array<i64: 1, 1, 64>}, {pipeline_mode = #tpu.pipeline_mode<synchronous>, transform_indices = @transform_2, window_bounds = array<i64: 64, 64>}, {pipeline_mode = #tpu.pipeline_mode<synchronous>, transform_indices = @transform_3, window_bounds = array<i64: 8, 64>}, {pipeline_mode = #tpu.pipeline_mode<synchronous>, transform_indices = @transform_4, window_bounds = array<i64: 64, 1>}, {pipeline_mode = #tpu.pipeline_mode<synchronous>, transform_indices = @transform_5, window_bounds = array<i64: 32, 256>}, {pipeline_mode = #tpu.pipeline_mode<synchronous>, transform_indices = @transform_6, window_bounds = array<i64: 1, 256>}, {pipeline_mode = #tpu.pipeline_mode<synchronous>, transform_indices = @transform_7, window_bounds = array<i64: 32, 32>}, {pipeline_mode = #tpu.pipeline_mode<synchronous>, transform_indices = @transform_8, window_bounds = array<i64: 1, 32>}, {pipeline_mode = #tpu.pipeline_mode<synchronous>, transform_indices = @transform_9, window_bounds = array<i64: 1, 32>}, {pipeline_mode = #tpu.pipeline_mode<synchronous>, transform_indices = @transform_10, window_bounds = array<i64: 1, 32>}, {pipeline_mode = #tpu.pipeline_mode<synchronous>, transform_indices = @transform_11, window_bounds = array<i64: 32, 64>}, {pipeline_mode = #tpu.pipeline_mode<synchronous>, transform_indices = @transform_12, window_bounds = array<i64: 1, 64>}, {pipeline_mode = #tpu.pipeline_mode<synchronous>, transform_indices = @transform_13, window_bounds = array<i64: 64, 128>}, {pipeline_mode = #tpu.pipeline_mode<synchronous>, transform_indices = @transform_14, window_bounds = array<i64: 1, 128>}, {transform_indices = @transform_15, window_bounds = array<i64: 8, 128>}]} {
    %c0 = arith.constant 0 : index
    %c0_0 = arith.constant 0 : index
    %c0_1 = arith.constant 0 : index
    %0 = vector.load %arg1[%c0, %c0_0, %c0_1] : memref<8x8x32xbf16, #tpu.memory_space<vmem>>, vector<8x8x32xbf16>
    %1 = vector.shape_cast %0 : vector<8x8x32xbf16> to vector<64x32xbf16>
    %c0_2 = arith.constant 0 : index
    %c0_3 = arith.constant 0 : index
    %2 = vector.load %arg6[%c0_2, %c0_3] : memref<32x256xbf16, #tpu.memory_space<vmem>>, vector<32x256xbf16>
    %cst = arith.constant dense<0.000000e+00> : vector<64x256xf32>
    %3 = tpu.matmul %1, %2, %cst {dimension_numbers = #tpu.dot_dimension_numbers<[1], [0], [0], [1], [0, 0, 1, 1], [], []>} : vector<64x32xbf16>, vector<32x256xbf16>, vector<64x256xf32> -> vector<64x256xf32>
    %c0_4 = arith.constant 0 : index
    %c0_5 = arith.constant 0 : index
    %4 = vector.load %arg7[%c0_4, %c0_5] : memref<1x256xf32, #tpu.memory_space<vmem>>, vector<1x256xf32>
    %5 = vector.broadcast %4 : vector<1x256xf32> to vector<64x256xf32>
    %6 = arith.addf %3, %5 : vector<64x256xf32>
    %7 = vector.extract_strided_slice %6 {offsets = [0, 0], sizes = [64, 128], strides = [1, 1]} : vector<64x256xf32> to vector<64x128xf32>
    %8 = vector.extract_strided_slice %6 {offsets = [0, 128], sizes = [64, 128], strides = [1, 1]} : vector<64x256xf32> to vector<64x128xf32>
    %cst_6 = arith.constant dense<0.000000e+00> : vector<64x64xf32>
    %9 = tpu.matmul %7, %8, %cst_6 {dimension_numbers = #tpu.dot_dimension_numbers<[1], [1], [0], [0], [0, 0, 1, 0], [], []>} : vector<64x128xf32>, vector<64x128xf32>, vector<64x64xf32> -> vector<64x64xf32>
    %c0_7 = arith.constant 0 : index
    %c0_8 = arith.constant 0 : index
    %c0_9 = arith.constant 0 : index
    %10 = vector.load %arg2[%c0_7, %c0_8, %c0_9] : memref<1x1x64xf32, #tpu.memory_space<vmem>>, vector<1x1x64xf32>
    %11 = vector.shape_cast %10 : vector<1x1x64xf32> to vector<1x64xf32>
    %12 = vector.broadcast %11 : vector<1x64xf32> to vector<64x64xf32>
    %13 = arith.addf %9, %12 : vector<64x64xf32>
    %c0_10 = arith.constant 0 : index
    %c0_11 = arith.constant 0 : index
    %14 = vector.load %arg3[%c0_10, %c0_11] : memref<64x64xf32, #tpu.memory_space<vmem>>, vector<64x64xf32>
    %15 = arith.addf %13, %14 : vector<64x64xf32>
    %cst_12 = arith.constant dense<0xFF800000> : vector<64xf32>
    %16 = vector.multi_reduction <maximumf>, %15, %cst_12 [1] : vector<64x64xf32> to vector<64xf32>
    %17 = vector.shape_cast %16 : vector<64xf32> to vector<64x1xf32>
    %18 = vector.broadcast %17 : vector<64x1xf32> to vector<64x64xf32>
    %19 = arith.subf %15, %18 : vector<64x64xf32>
    %20 = math.exp %19 : vector<64x64xf32>
    %cst_13 = arith.constant dense<0.000000e+00> : vector<64xf32>
    %21 = vector.multi_reduction <add>, %20, %cst_13 [1] : vector<64x64xf32> to vector<64xf32>
    %22 = vector.shape_cast %21 : vector<64xf32> to vector<64x1xf32>
    %c0_14 = arith.constant 0 : index
    %c0_15 = arith.constant 0 : index
    %23 = vector.load %arg5[%c0_14, %c0_15] : memref<64x1xf32, #tpu.memory_space<vmem>>, vector<64x1xf32>
    %24 = arith.divf %23, %22 : vector<64x1xf32>
    %25 = vector.broadcast %24 : vector<64x1xf32> to vector<64x64xf32>
    %26 = arith.mulf %20, %25 : vector<64x64xf32>
    %cst_16 = arith.constant dense<0.000000e+00> : vector<64xf32>
    %27 = vector.multi_reduction <add>, %26, %cst_16 [0] : vector<64x64xf32> to vector<64xf32>
    %28 = vector.shape_cast %27 : vector<64xf32> to vector<1x64xf32>
    %c0_17 = arith.constant 0 : index
    %c0_18 = arith.constant 0 : index
    %29 = vector.load %arg4[%c0_17, %c0_18] : memref<8x64xf32, #tpu.memory_space<vmem>>, vector<8x64xf32>
    %30 = vector.broadcast %28 : vector<1x64xf32> to vector<8x64xf32>
    %31 = arith.mulf %29, %30 : vector<8x64xf32>
    %32 = arith.truncf %31 : vector<8x64xf32> to vector<8x64xbf16>
    %cst_19 = arith.constant dense<0.000000e+00> : vector<8x32xf32>
    %33 = tpu.matmul %32, %1, %cst_19 {dimension_numbers = #tpu.dot_dimension_numbers<[1], [0], [0], [1], [0, 0, 1, 1], [], []>} : vector<8x64xbf16>, vector<64x32xbf16>, vector<8x32xf32> -> vector<8x32xf32>
    %34 = arith.truncf %33 : vector<8x32xf32> to vector<8x32xbf16>
    %c0_20 = arith.constant 0 : index
    %c0_21 = arith.constant 0 : index
    %35 = vector.load %arg8[%c0_20, %c0_21] : memref<32x32xbf16, #tpu.memory_space<vmem>>, vector<32x32xbf16>
    %cst_22 = arith.constant dense<0.000000e+00> : vector<8x32xf32>
    %36 = tpu.matmul %34, %35, %cst_22 {dimension_numbers = #tpu.dot_dimension_numbers<[1], [0], [0], [1], [0, 0, 1, 1], [], []>} : vector<8x32xbf16>, vector<32x32xbf16>, vector<8x32xf32> -> vector<8x32xf32>
    %c0_23 = arith.constant 0 : index
    %c0_24 = arith.constant 0 : index
    %37 = vector.load %arg9[%c0_23, %c0_24] : memref<1x32xf32, #tpu.memory_space<vmem>>, vector<1x32xf32>
    %38 = vector.broadcast %37 : vector<1x32xf32> to vector<8x32xf32>
    %39 = arith.addf %36, %38 : vector<8x32xf32>
    %cst_25 = arith.constant dense<0.000000e+00> : vector<8xf32>
    %40 = vector.multi_reduction <add>, %39, %cst_25 [1] : vector<8x32xf32> to vector<8xf32>
    %41 = vector.shape_cast %40 : vector<8xf32> to vector<8x1xf32>
    %cst_26 = arith.constant 3.200000e+01 : f32
    %42 = vector.broadcast %cst_26 : f32 to vector<8x1xf32>
    %43 = arith.divf %41, %42 : vector<8x1xf32>
    %44 = vector.broadcast %43 : vector<8x1xf32> to vector<8x32xf32>
    %45 = arith.subf %39, %44 : vector<8x32xf32>
    %46 = arith.mulf %45, %45 : vector<8x32xf32>
    %cst_27 = arith.constant dense<0.000000e+00> : vector<8xf32>
    %47 = vector.multi_reduction <add>, %46, %cst_27 [1] : vector<8x32xf32> to vector<8xf32>
    %48 = vector.shape_cast %47 : vector<8xf32> to vector<8x1xf32>
    %cst_28 = arith.constant 3.200000e+01 : f32
    %49 = vector.broadcast %cst_28 : f32 to vector<8x1xf32>
    %50 = arith.divf %48, %49 : vector<8x1xf32>
    %51 = vector.broadcast %43 : vector<8x1xf32> to vector<8x32xf32>
    %52 = arith.subf %39, %51 : vector<8x32xf32>
    %cst_29 = arith.constant 9.99999974E-6 : f32
    %53 = vector.broadcast %cst_29 : f32 to vector<8x1xf32>
    %54 = arith.addf %50, %53 : vector<8x1xf32>
    %55 = math.rsqrt %54 : vector<8x1xf32>
    %56 = vector.broadcast %55 : vector<8x1xf32> to vector<8x32xf32>
    %57 = arith.mulf %52, %56 : vector<8x32xf32>
    %c0_30 = arith.constant 0 : index
    %c0_31 = arith.constant 0 : index
    %58 = vector.load %arg10[%c0_30, %c0_31] : memref<1x32xf32, #tpu.memory_space<vmem>>, vector<1x32xf32>
    %59 = vector.broadcast %58 : vector<1x32xf32> to vector<8x32xf32>
    %60 = arith.mulf %57, %59 : vector<8x32xf32>
    %c0_32 = arith.constant 0 : index
    %c0_33 = arith.constant 0 : index
    %61 = vector.load %arg11[%c0_32, %c0_33] : memref<1x32xf32, #tpu.memory_space<vmem>>, vector<1x32xf32>
    %62 = vector.broadcast %61 : vector<1x32xf32> to vector<8x32xf32>
    %63 = arith.addf %60, %62 : vector<8x32xf32>
    %64 = arith.truncf %63 : vector<8x32xf32> to vector<8x32xbf16>
    %c0_34 = arith.constant 0 : index
    %c0_35 = arith.constant 0 : index
    %65 = vector.load %arg12[%c0_34, %c0_35] : memref<32x64xbf16, #tpu.memory_space<vmem>>, vector<32x64xbf16>
    %cst_36 = arith.constant dense<0.000000e+00> : vector<8x64xf32>
    %66 = tpu.matmul %64, %65, %cst_36 {dimension_numbers = #tpu.dot_dimension_numbers<[1], [0], [0], [1], [0, 0, 1, 1], [], []>} : vector<8x32xbf16>, vector<32x64xbf16>, vector<8x64xf32> -> vector<8x64xf32>
    %c0_37 = arith.constant 0 : index
    %c0_38 = arith.constant 0 : index
    %67 = vector.load %arg13[%c0_37, %c0_38] : memref<1x64xf32, #tpu.memory_space<vmem>>, vector<1x64xf32>
    %68 = vector.broadcast %67 : vector<1x64xf32> to vector<8x64xf32>
    %69 = arith.addf %66, %68 : vector<8x64xf32>
    %cst_39 = arith.constant 0.000000e+00 : f32
    %70 = vector.broadcast %cst_39 : f32 to vector<8x64xf32>
    %71 = arith.maximumf %69, %70 : vector<8x64xf32>
    %72 = arith.truncf %71 : vector<8x64xf32> to vector<8x64xbf16>
    %c0_40 = arith.constant 0 : index
    %c0_41 = arith.constant 0 : index
    %73 = vector.load %arg14[%c0_40, %c0_41] : memref<64x128xbf16, #tpu.memory_space<vmem>>, vector<64x128xbf16>
    %cst_42 = arith.constant dense<0.000000e+00> : vector<8x128xf32>
    %74 = tpu.matmul %72, %73, %cst_42 {dimension_numbers = #tpu.dot_dimension_numbers<[1], [0], [0], [1], [0, 0, 1, 1], [], []>} : vector<8x64xbf16>, vector<64x128xbf16>, vector<8x128xf32> -> vector<8x128xf32>
    %c0_43 = arith.constant 0 : index
    %c0_44 = arith.constant 0 : index
    %75 = vector.load %arg15[%c0_43, %c0_44] : memref<1x128xf32, #tpu.memory_space<vmem>>, vector<1x128xf32>
    %76 = vector.broadcast %75 : vector<1x128xf32> to vector<8x128xf32>
    %77 = arith.addf %74, %76 : vector<8x128xf32>
    %c0_45 = arith.constant 0 : index
    %c0_46 = arith.constant 0 : index
    %78 = vector.load %arg16[%c0_45, %c0_46] : memref<8x128xf32, #tpu.memory_space<vmem>>, vector<8x128xf32>
    tpu.vector_store %arg16[%c0_45, %c0_46], %77 {strides = array<i32>} : memref<8x128xf32, #tpu.memory_space<vmem>>, vector<8x128xf32>,
    return
  }
  func.func @transform_0(%arg0: i32) -> (i32, i32, i32) {
    %c0_i32 = arith.constant 0 : i32
    %c0_i32_0 = arith.constant 0 : i32
    %c0_i32_1 = arith.constant 0 : i32
    return %arg0, %c0_i32, %c0_i32_0 : i32, i32, i32
  }
  func.func @transform_1(%arg0: i32) -> (i32, i32, i32) {
    %c0_i32 = arith.constant 0 : i32
    %c0_i32_0 = arith.constant 0 : i32
    %c0_i32_1 = arith.constant 0 : i32
    return %arg0, %c0_i32, %c0_i32_0 : i32, i32, i32
  }
  func.func @transform_2(%arg0: i32) -> (i32, i32) {
    %c0_i32 = arith.constant 0 : i32
    %c0_i32_0 = arith.constant 0 : i32
    %c0_i32_1 = arith.constant 0 : i32
    return %c0_i32, %c0_i32_0 : i32, i32
  }
  func.func @transform_3(%arg0: i32) -> (i32, i32) {
    %c0_i32 = arith.constant 0 : i32
    %c0_i32_0 = arith.constant 0 : i32
    %c0_i32_1 = arith.constant 0 : i32
    return %c0_i32, %c0_i32_0 : i32, i32
  }
  func.func @transform_4(%arg0: i32) -> (i32, i32) {
    %c0_i32 = arith.constant 0 : i32
    %c0_i32_0 = arith.constant 0 : i32
    %c0_i32_1 = arith.constant 0 : i32
    return %c0_i32, %c0_i32_0 : i32, i32
  }
  func.func @transform_5(%arg0: i32) -> (i32, i32) {
    %c0_i32 = arith.constant 0 : i32
    %c0_i32_0 = arith.constant 0 : i32
    %c0_i32_1 = arith.constant 0 : i32
    return %c0_i32, %c0_i32_0 : i32, i32
  }
  func.func @transform_6(%arg0: i32) -> (i32, i32) {
    %c0_i32 = arith.constant 0 : i32
    %c0_i32_0 = arith.constant 0 : i32
    %c0_i32_1 = arith.constant 0 : i32
    return %c0_i32, %c0_i32_0 : i32, i32
  }
  func.func @transform_7(%arg0: i32) -> (i32, i32) {
    %c0_i32 = arith.constant 0 : i32
    %c0_i32_0 = arith.constant 0 : i32
    %c0_i32_1 = arith.constant 0 : i32
    return %c0_i32, %c0_i32_0 : i32, i32
  }
  func.func @transform_8(%arg0: i32) -> (i32, i32) {
    %c0_i32 = arith.constant 0 : i32
    %c0_i32_0 = arith.constant 0 : i32
    %c0_i32_1 = arith.constant 0 : i32
    return %c0_i32, %c0_i32_0 : i32, i32
  }
  func.func @transform_9(%arg0: i32) -> (i32, i32) {
    %c0_i32 = arith.constant 0 : i32
    %c0_i32_0 = arith.constant 0 : i32
    %c0_i32_1 = arith.constant 0 : i32
    return %c0_i32, %c0_i32_0 : i32, i32
  }
  func.func @transform_10(%arg0: i32) -> (i32, i32) {
    %c0_i32 = arith.constant 0 : i32
    %c0_i32_0 = arith.constant 0 : i32
    %c0_i32_1 = arith.constant 0 : i32
    return %c0_i32, %c0_i32_0 : i32, i32
  }
  func.func @transform_11(%arg0: i32) -> (i32, i32) {
    %c0_i32 = arith.constant 0 : i32
    %c0_i32_0 = arith.constant 0 : i32
    %c0_i32_1 = arith.constant 0 : i32
    return %c0_i32, %c0_i32_0 : i32, i32
  }
  func.func @transform_12(%arg0: i32) -> (i32, i32) {
    %c0_i32 = arith.constant 0 : i32
    %c0_i32_0 = arith.constant 0 : i32
    %c0_i32_1 = arith.constant 0 : i32
    return %c0_i32, %c0_i32_0 : i32, i32
  }
  func.func @transform_13(%arg0: i32) -> (i32, i32) {
    %c0_i32 = arith.constant 0 : i32
    %c0_i32_0 = arith.constant 0 : i32
    %c0_i32_1 = arith.constant 0 : i32
    return %c0_i32, %c0_i32_0 : i32, i32
  }
  func.func @transform_14(%arg0: i32) -> (i32, i32) {
    %c0_i32 = arith.constant 0 : i32
    %c0_i32_0 = arith.constant 0 : i32
    %c0_i32_1 = arith.constant 0 : i32
    return %c0_i32, %c0_i32_0 : i32, i32
  }
  func.func @transform_15(%arg0: i32) -> (i32, i32) {
    %c0_i32 = arith.constant 0 : i32
    %c0_i32_0 = arith.constant 0 : i32
    return %arg0, %c0_i32 : i32, i32
  }
}

</mosaic_0001>

<llo_original>
// kernel: tpu_custom_call.1
$region0: #{tpu_custom_call.1}
  #allocation0 [shape = 'u32[]', space=smem, size = 0x4, offset = 0x4, fixed_abs, tag = 'smem constant byte address 0x4 - core index']
  #allocation1 [shape = 'u32[72,128]{1,0:T(1,128)}', space=vmem, size = 0x9000, scoped, tag = 'internal scratch']
  %s0 = inlined_call_operand.hbm [shape: bf16[8,8,32], index: 0, kind: input, shape index: {}]
  %s1 = inlined_call_operand.vmem [shape: f32[1,1,64], index: 1, kind: input, shape index: {}]
  %s2 = inlined_call_operand.vmem [shape: f32[64,64], index: 2, kind: input, shape index: {}]
  %s3 = inlined_call_operand.hbm [shape: f32[8,64], index: 3, kind: input, shape index: {}]
  %s4 = inlined_call_operand.vmem [shape: f32[64,1], index: 4, kind: input, shape index: {}]
  %s5 = inlined_call_operand.hbm [shape: bf16[32,256], index: 5, kind: input, shape index: {}]
  %s6 = inlined_call_operand.vmem [shape: f32[1,256], index: 6, kind: input, shape index: {}]
  %s7 = inlined_call_operand.hbm [shape: bf16[32,32], index: 7, kind: input, shape index: {}]
  %s8 = inlined_call_operand.vmem [shape: f32[1,32], index: 8, kind: input, shape index: {}]
  %s9 = inlined_call_operand.vmem [shape: f32[1,32], index: 9, kind: input, shape index: {}]
  %s10 = inlined_call_operand.vmem [shape: f32[1,32], index: 10, kind: input, shape index: {}]
  %s11 = inlined_call_operand.hbm [shape: bf16[32,64], index: 11, kind: input, shape index: {}]
  %s12 = inlined_call_operand.vmem [shape: f32[1,64], index: 12, kind: input, shape index: {}]
  %s13 = inlined_call_operand.hbm [shape: bf16[64,128], index: 13, kind: input, shape index: {}]
  %s14 = inlined_call_operand.vmem [shape: f32[1,128], index: 14, kind: input, shape index: {}]
  %s15 = inlined_call_operand.hbm [shape: f32[8,128], index: 15, kind: output, shape index: {}]
  %s16 = sld [smem:[#allocation0]]
  $region94: #{tpu_custom_call.1} parent=0
    _
  %s18 = ssub.s32 1, %s16
  %s19 = scalar_select 0, %s18, %s16
  $region1: #{tpu_custom_call.1} parent=0
    #allocation2 [shape = 'u8[16384]{0}', space=vmem, size = 0x4000, scoped, tag = 'input window, operand 0, single buffered']
    #allocation3 [shape = 's32[1]{0}', space=sflag, size = 0x4, scoped, tag = 'scoped memory for tpu_custom_call.1']
    #allocation4 [shape = 's32[1]{0}', space=sflag, size = 0x4, scoped, tag = 'scoped memory for tpu_custom_call.1']
    #allocation5 [shape = 'u8[4096]{0}', space=vmem, size = 0x1000, scoped, tag = 'input window, operand 3, single buffered']
    #allocation6 [shape = 's32[1]{0}', space=sflag, size = 0x4, scoped, tag = 'scoped memory for tpu_custom_call.1']
    #allocation7 [shape = 'u8[16384]{0}', space=vmem, size = 0x4000, scoped, tag = 'input window, operand 5, single buffered']
    #allocation8 [shape = 'u8[8192]{0}', space=vmem, size = 0x2000, scoped, tag = 'input window, operand 7, single buffered']
    #allocation9 [shape = 's32[1]{0}', space=sflag, size = 0x4, scoped, tag = 'scoped memory for tpu_custom_call.1']
    #allocation10 [shape = 'u8[8192]{0}', space=vmem, size = 0x2000, scoped, tag = 'input window, operand 11, single buffered']
    #allocation11 [shape = 'u8[16384]{0}', space=vmem, size = 0x4000, scoped, tag = 'input window, operand 13, single buffered']
    #allocation12 [shape = 's32[1]{0}', space=sflag, size = 0x4, scoped, tag = 'scoped memory for tpu_custom_call.1']
    #allocation13 [shape = 'u8[4096]{0}', space=vmem, size = 0x1000, scoped, tag = 'output window, operand 0, single buffered']
    %20 = vsyncpa [#allocation3], 0
    %21 = vsyncpa [#allocation6], 0
    %22 = vsyncpa [#allocation9], 0
    %23 = vsyncpa [#allocation12], 0
    %24 = vsyncpa [#allocation4], 0
    // Predicated region
    $region2: #{tpu_custom_call.1} parent=1 // pred_check
      _
    $region3: #{tpu_custom_call.1} parent=1 // pred_check_branch
      %26 = sbr.rel (0) target = $region5
    $region4: #{tpu_custom_call.1} parent=1 // pred_region
      %28 = vsyncadd [#allocation3], 0
      %s29 = sshll.u32 %s0, 4
      %s30 = int_to_ptr.hbm [resolvable:$true] %s29
      %s31 = sshll.u32 [#allocation2], 4
      %s32 = int_to_ptr.vmem [resolvable:$true] %s31
      %37 = dma.hbm_to_vmem [thread:$0]  %s30, 512, %s32, [#allocation3], 64, 64, 4
    $region5: #{tpu_custom_call.1} parent=1 // pred_fallthru
      _
    // Predicated region
    $region6: #{tpu_custom_call.1} parent=1 // pred_check
      _
    $region7: #{tpu_custom_call.1} parent=1 // pred_check_branch
      %39 = sbr.rel (0) target = $region9
    $region8: #{tpu_custom_call.1} parent=1 // pred_region
      _
    $region9: #{tpu_custom_call.1} parent=1 // pred_fallthru
      _
    // Predicated region
    $region10: #{tpu_custom_call.1} parent=1 // pred_check
      _
    $region11: #{tpu_custom_call.1} parent=1 // pred_check_branch
      %41 = sbr.rel (0) target = $region13
    $region12: #{tpu_custom_call.1} parent=1 // pred_region
      _
    $region13: #{tpu_custom_call.1} parent=1 // pred_fallthru
      _
    // Predicated region
    $region14: #{tpu_custom_call.1} parent=1 // pred_check
      _
    $region15: #{tpu_custom_call.1} parent=1 // pred_check_branch
      %43 = sbr.rel (0) target = $region17
    $region16: #{tpu_custom_call.1} parent=1 // pred_region
      %45 = vsyncadd [#allocation6], 0
      %s47 = sshll.u32 %s3, 4
      %s48 = int_to_ptr.hbm [resolvable:$true] %s47
      %s49 = sshll.u32 [#allocation5], 4
      %s50 = int_to_ptr.vmem [resolvable:$true] %s49
      %52 = dma.hbm_to_vmem [thread:$0]  %s48, 128, %s50, [#allocation6]
    $region17: #{tpu_custom_call.1} parent=1 // pred_fallthru
      _
    // Predicated region
    $region18: #{tpu_custom_call.1} parent=1 // pred_check
      _
    $region19: #{tpu_custom_call.1} parent=1 // pred_check_branch
      %54 = sbr.rel (0) target = $region21
    $region20: #{tpu_custom_call.1} parent=1 // pred_region
      _
    $region21: #{tpu_custom_call.1} parent=1 // pred_fallthru
      _
    // Predicated region
    $region22: #{tpu_custom_call.1} parent=1 // pred_check
      _
    $region23: #{tpu_custom_call.1} parent=1 // pred_check_branch
      %56 = sbr.rel (0) target = $region25
    $region24: #{tpu_custom_call.1} parent=1 // pred_region
      %58 = vsyncadd [#allocation6], 0
      %s59 = sshll.u32 %s5, 4
      %s60 = int_to_ptr.hbm [resolvable:$true] %s59
      %s61 = sshll.u32 [#allocation7], 4
      %s62 = int_to_ptr.vmem [resolvable:$true] %s61
      %67 = dma.hbm_to_vmem [thread:$0]  %s60, 512, %s62, [#allocation6], 128, 128, 8
    $region25: #{tpu_custom_call.1} parent=1 // pred_fallthru
      _
    // Predicated region
    $region26: #{tpu_custom_call.1} parent=1 // pred_check
      _
    $region27: #{tpu_custom_call.1} parent=1 // pred_check_branch
      %69 = sbr.rel (0) target = $region29
    $region28: #{tpu_custom_call.1} parent=1 // pred_region
      _
    $region29: #{tpu_custom_call.1} parent=1 // pred_fallthru
      _
    // Predicated region
    $region30: #{tpu_custom_call.1} parent=1 // pred_check
      _
    $region31: #{tpu_custom_call.1} parent=1 // pred_check_branch
      %71 = sbr.rel (0) target = $region33
    $region32: #{tpu_custom_call.1} parent=1 // pred_region
      %73 = vsyncadd [#allocation9], 0
      %s74 = sshll.u32 %s7, 4
      %s75 = int_to_ptr.hbm [resolvable:$true] %s74
      %s76 = sshll.u32 [#allocation8], 4
      %s77 = int_to_ptr.vmem [resolvable:$true] %s76
      %82 = dma.hbm_to_vmem [thread:$0]  %s75, 256, %s77, [#allocation9], 64, 64, 4
    $region33: #{tpu_custom_call.1} parent=1 // pred_fallthru
      _
    // Predicated region
    $region34: #{tpu_custom_call.1} parent=1 // pred_check
      _
    $region35: #{tpu_custom_call.1} parent=1 // pred_check_branch
      %84 = sbr.rel (0) target = $region37
    $region36: #{tpu_custom_call.1} parent=1 // pred_region
      _
    $region37: #{tpu_custom_call.1} parent=1 // pred_fallthru
      _
    // Predicated region
    $region38: #{tpu_custom_call.1} parent=1 // pred_check
      _
    $region39: #{tpu_custom_call.1} parent=1 // pred_check_branch
      %86 = sbr.rel (0) target = $region41
    $region40: #{tpu_custom_call.1} parent=1 // pred_region
      _
    $region41: #{tpu_custom_call.1} parent=1 // pred_fallthru
      _
    // Predicated region
    $region42: #{tpu_custom_call.1} parent=1 // pred_check
      _
    $region43: #{tpu_custom_call.1} parent=1 // pred_check_branch
      %88 = sbr.rel (0) target = $region45
    $region44: #{tpu_custom_call.1} parent=1 // pred_region
      _
    $region45: #{tpu_custom_call.1} parent=1 // pred_fallthru
      _
    // Predicated region
    $region46: #{tpu_custom_call.1} parent=1 // pred_check
      _
    $region47: #{tpu_custom_call.1} parent=1 // pred_check_branch
      %90 = sbr.rel (0) target = $region49
    $region48: #{tpu_custom_call.1} parent=1 // pred_region
      %92 = vsyncadd [#allocation9], 0
      %s93 = sshll.u32 %s11, 4
      %s94 = int_to_ptr.hbm [resolvable:$true] %s93
      %s95 = sshll.u32 [#allocation10], 4
      %s96 = int_to_ptr.vmem [resolvable:$true] %s95
      %101 = dma.hbm_to_vmem [thread:$0]  %s94, 256, %s96, [#allocation9], 64, 64, 4
    $region49: #{tpu_custom_call.1} parent=1 // pred_fallthru
      _
    // Predicated region
    $region50: #{tpu_custom_call.1} parent=1 // pred_check
      _
    $region51: #{tpu_custom_call.1} parent=1 // pred_check_branch
      %103 = sbr.rel (0) target = $region53
    $region52: #{tpu_custom_call.1} parent=1 // pred_region
      _
    $region53: #{tpu_custom_call.1} parent=1 // pred_fallthru
      _
    // Predicated region
    $region54: #{tpu_custom_call.1} parent=1 // pred_check
      _
    $region55: #{tpu_custom_call.1} parent=1 // pred_check_branch
      %105 = sbr.rel (0) target = $region57
    $region56: #{tpu_custom_call.1} parent=1 // pred_region
      %107 = vsyncadd [#allocation12], 0
      %s108 = sshll.u32 %s13, 4
      %s109 = int_to_ptr.hbm [resolvable:$true] %s108
      %s110 = sshll.u32 [#allocation11], 4
      %s111 = int_to_ptr.vmem [resolvable:$true] %s110
      %116 = dma.hbm_to_vmem [thread:$0]  %s109, 512, %s111, [#allocation12], 64, 64, 4
    $region57: #{tpu_custom_call.1} parent=1 // pred_fallthru
      _
    // Predicated region
    $region58: #{tpu_custom_call.1} parent=1 // pred_check
      _
    $region59: #{tpu_custom_call.1} parent=1 // pred_check_branch
      %118 = sbr.rel (0) target = $region61
    $region60: #{tpu_custom_call.1} parent=1 // pred_region
      _
    $region61: #{tpu_custom_call.1} parent=1 // pred_fallthru
      _
    // Predicated region
    $region62: #{tpu_custom_call.1} parent=1 // pred_check
      _
    $region63: #{tpu_custom_call.1} parent=1 // pred_check_branch
      %120 = sbr.rel (0) target = $region65
    $region64: #{tpu_custom_call.1} parent=1 // pred_region
      %122 = dma.done [#allocation3], 512
    $region65: #{tpu_custom_call.1} parent=1 // pred_fallthru
      _
    // Predicated region
    $region66: #{tpu_custom_call.1} parent=1 // pred_check
      _
    $region67: #{tpu_custom_call.1} parent=1 // pred_check_branch
      %124 = sbr.rel (0) target = $region69
    $region68: #{tpu_custom_call.1} parent=1 // pred_region
      %126 = dma.done [#allocation6], 128
    $region69: #{tpu_custom_call.1} parent=1 // pred_fallthru
      _
    // Predicated region
    $region70: #{tpu_custom_call.1} parent=1 // pred_check
      _
    $region71: #{tpu_custom_call.1} parent=1 // pred_check_branch
      %128 = sbr.rel (0) target = $region73
    $region72: #{tpu_custom_call.1} parent=1 // pred_region
      %130 = dma.done [#allocation6], 512
    $region73: #{tpu_custom_call.1} parent=1 // pred_fallthru
      _
    // Predicated region
    $region74: #{tpu_custom_call.1} parent=1 // pred_check
      _
    $region75: #{tpu_custom_call.1} parent=1 // pred_check_branch
      %132 = sbr.rel (0) target = $region77
    $region76: #{tpu_custom_call.1} parent=1 // pred_region
      %134 = dma.done [#allocation9], 256
    $region77: #{tpu_custom_call.1} parent=1 // pred_fallthru
      _
    // Predicated region
    $region78: #{tpu_custom_call.1} parent=1 // pred_check
      _
    $region79: #{tpu_custom_call.1} parent=1 // pred_check_branch
      %136 = sbr.rel (0) target = $region81
    $region80: #{tpu_custom_call.1} parent=1 // pred_region
      %138 = dma.done [#allocation9], 256
    $region81: #{tpu_custom_call.1} parent=1 // pred_fallthru
      _
    // Predicated region
    $region82: #{tpu_custom_call.1} parent=1 // pred_check
      _
    $region83: #{tpu_custom_call.1} parent=1 // pred_check_branch
      %140 = sbr.rel (0) target = $region85
    $region84: #{tpu_custom_call.1} parent=1 // pred_region
      %142 = dma.done [#allocation12], 512
    $region85: #{tpu_custom_call.1} parent=1 // pred_fallthru
      _
    %v144 = vld [vmem:[#allocation2] sm:$0xf]
    %v145 = vld [vmem:[#allocation2 + $0x4] sm:$0xf]
    %v146 = vld [vmem:[#allocation2 + $0x8] sm:$0xf]
    %v147 = vld [vmem:[#allocation2 + $0xc] sm:$0xf]
    %v148 = vld [vmem:[#allocation2 + $0x10] sm:$0xf]
    %v149 = vld [vmem:[#allocation2 + $0x14] sm:$0xf]
    %v150 = vld [vmem:[#allocation2 + $0x18] sm:$0xf]
    %v151 = vld [vmem:[#allocation2 + $0x1c] sm:$0xf]
    %v152 = vld [vmem:[#allocation7] sm:$0xff]
    %v153 = vld [vmem:[#allocation7 + $0x8] sm:$0xff]
    %v154 = vld [vmem:[#allocation7 + $0x10] sm:$0xff]
    %v155 = vld [vmem:[#allocation7 + $0x18] sm:$0xff]
    %v156 = vld [vmem:[%s6] sm:$0x3]
    %v158 = vperm.slane %v156, 0
    %v159 = vperm.slane %v156, 1
    %v170 = vunpack.c.l.b16 %v144
    %v171 = vunpack.c.l.b16 %v145
    %v172 = vunpack.c.l.b16 %v146
    %v173 = vunpack.c.l.b16 %v147
    %v174 = vunpack.c.l.b16 %v148
    %v175 = vunpack.c.l.b16 %v149
    %v176 = vunpack.c.l.b16 %v150
    %v177 = vunpack.c.l.b16 %v151
    %v178 = vpack.c.b16 %v171, %v170
    %v179 = vpack.c.b16 %v173, %v172
    %v180 = vpack.c.b16 %v175, %v174
    %v181 = vpack.c.b16 %v177, %v176
    %v186 = vunpack.c.l.b16 %v152
    %v187 = vunpack.c.h.b16 %v152
    %v188 = vunpack.c.l.b16 %v153
    %v189 = vunpack.c.h.b16 %v153
    %v190 = vunpack.c.l.b16 %v154
    %v191 = vunpack.c.h.b16 %v154
    %v192 = vunpack.c.l.b16 %v155
    %v193 = vunpack.c.h.b16 %v155
    %v194 = vpack.c.b16 %v188, %v186
    %v195 = vpack.c.b16 %v189, %v187
    %v196 = vpack.c.b16 %v192, %v190
    %v197 = vpack.c.b16 %v193, %v191
    %vm202 = vcmask 261120
    %v204 = vsel %vm202, %v178, 0
    %v207 = vsel %vm202, %v179, 0
    %v210 = vsel %vm202, %v180, 0
    %v213 = vsel %vm202, %v181, 0
    %215 = vmatpush.bf16.msra.mxu0 0
    %216 = vmatpush.bf16.msra.mxu0 0
    %217 = vmatpush.bf16.msra.mxu0 0
    %218 = vmatpush.bf16.msra.mxu0 0
    %219 = vmatpush.bf16.msra.mxu0 0
    %220 = vmatpush.bf16.msra.mxu0 0
    %221 = vmatpush.bf16.msra.mxu0 %v196
    %222 = vmatpush.bf16.msra.mxu0 %v194
    %223 = vmatmul.bf16.gmra.mxu0 %v204
    %v224 = vpop.f32.mrf.mxu0
    %v225 = vadd.f32 %v158, %v224
    %v226 = vpop.f32.mrf.mxu0
    %v227 = vadd.f32 %v158, %v226
    %228 = vmatmul.bf16.gmra.mxu0 %v207
    %v229 = vpop.f32.mrf.mxu0
    %v230 = vadd.f32 %v158, %v229
    %v231 = vpop.f32.mrf.mxu0
    %v232 = vadd.f32 %v158, %v231
    %233 = vmatmul.bf16.gmra.mxu0 %v210
    %v234 = vpop.f32.mrf.mxu0
    %v235 = vadd.f32 %v158, %v234
    %v236 = vpop.f32.mrf.mxu0
    %v237 = vadd.f32 %v158, %v236
    %238 = vmatmul.bf16.gmra.mxu0 %v213
    %v239 = vpop.f32.mrf.mxu0
    %v240 = vadd.f32 %v158, %v239
    %v241 = vpop.f32.mrf.mxu0
    %v242 = vadd.f32 %v158, %v241
    %243 = vdwg.mxu0
    %244 = vmatpush.bf16.msra.mxu0 0
    %245 = vmatpush.bf16.msra.mxu0 0
    %246 = vmatpush.bf16.msra.mxu0 0
    %247 = vmatpush.bf16.msra.mxu0 0
    %248 = vmatpush.bf16.msra.mxu0 0
    %249 = vmatpush.bf16.msra.mxu0 0
    %250 = vmatpush.bf16.msra.mxu0 %v197
    %251 = vmatpush.bf16.msra.mxu0 %v195
    %252 = vmatmul.bf16.gmra.mxu0 %v204
    %v253 = vpop.f32.mrf.mxu0
    %v254 = vadd.f32 %v159, %v253
    %v255 = vpop.f32.mrf.mxu0
    %v256 = vadd.f32 %v159, %v255
    %257 = vmatmul.bf16.gmra.mxu0 %v207
    %v258 = vpop.f32.mrf.mxu0
    %v259 = vadd.f32 %v159, %v258
    %v260 = vpop.f32.mrf.mxu0
    %v261 = vadd.f32 %v159, %v260
    %262 = vmatmul.bf16.gmra.mxu0 %v210
    %v263 = vpop.f32.mrf.mxu0
    %v264 = vadd.f32 %v159, %v263
    %v265 = vpop.f32.mrf.mxu0
    %v266 = vadd.f32 %v159, %v265
    %267 = vmatmul.bf16.gmra.mxu0 %v213
    %v268 = vpop.f32.mrf.mxu0
    %v269 = vadd.f32 %v159, %v268
    %v270 = vpop.f32.mrf.mxu0
    %v271 = vadd.f32 %v159, %v270
    %272 = vdwg.mxu0
    %v273 = vld [vmem:[%s1] sm:$0x1]
    %v275 = vperm.slane %v273, 0
    %277 = vmatpush.xpose.msra.mxu0 0.0
    %278 = vmatpush.xpose.msra.mxu0 0.0
    %279 = vmatpush.xpose.msra.mxu0 0.0
    %280 = vmatpush.xpose.msra.mxu0 0.0
    %281 = vmatpush.xpose.msra.mxu0 0.0
    %282 = vmatpush.xpose.msra.mxu0 0.0
    %283 = vmatpush.xpose.msra.mxu0 0.0
    %284 = vmatpush.xpose.msra.mxu0 0.0
    %285 = vmatpush.xpose.msra.mxu0 %v271
    %286 = vmatpush.xpose.msra.mxu0 %v269
    %287 = vmatpush.xpose.msra.mxu0 %v266
    %288 = vmatpush.xpose.msra.mxu0 %v264
    %289 = vmatpush.xpose.msra.mxu0 %v261
    %290 = vmatpush.xpose.msra.mxu0 %v259
    %291 = vmatpush.xpose.msra.mxu0 %v256
    %292 = vmatpush.xpose.msra.mxu0 %v254
    %293 = vmatmul.f32.gmra.mxu0 %v225
    %v294 = vpop.f32.mrf.mxu0
    %v295 = vadd.f32 %v275, %v294
    %296 = vmatmul.f32.gmra.mxu0 %v227
    %v297 = vpop.f32.mrf.mxu0
    %v298 = vadd.f32 %v275, %v297
    %299 = vmatmul.f32.gmra.mxu0 %v230
    %v300 = vpop.f32.mrf.mxu0
    %v301 = vadd.f32 %v275, %v300
    %302 = vmatmul.f32.gmra.mxu0 %v232
    %v303 = vpop.f32.mrf.mxu0
    %v304 = vadd.f32 %v275, %v303
    %305 = vmatmul.f32.gmra.mxu0 %v235
    %v306 = vpop.f32.mrf.mxu0
    %v307 = vadd.f32 %v275, %v306
    %308 = vmatmul.f32.gmra.mxu0 %v237
    %v309 = vpop.f32.mrf.mxu0
    %v310 = vadd.f32 %v275, %v309
    %311 = vmatmul.f32.gmra.mxu0 %v240
    %v312 = vpop.f32.mrf.mxu0
    %v313 = vadd.f32 %v275, %v312
    %314 = vmatmul.f32.gmra.mxu0 %v242
    %v315 = vpop.f32.mrf.mxu0
    %v316 = vadd.f32 %v275, %v315
    %317 = vdwg.mxu0
    %v318 = vld [vmem:[%s2] sm:$0xff]
    %v319 = vld [vmem:[%s2 + $0x8] sm:$0xff]
    %v320 = vld [vmem:[%s2 + $0x10] sm:$0xff]
    %v321 = vld [vmem:[%s2 + $0x18] sm:$0xff]
    %v322 = vld [vmem:[%s2 + $0x20] sm:$0xff]
    %v323 = vld [vmem:[%s2 + $0x28] sm:$0xff]
    %v324 = vld [vmem:[%s2 + $0x30] sm:$0xff]
    %v325 = vld [vmem:[%s2 + $0x38] sm:$0xff]
    %v326 = vadd.f32 %v295, %v318
    %v327 = vadd.f32 %v298, %v319
    %v328 = vadd.f32 %v301, %v320
    %v329 = vadd.f32 %v304, %v321
    %v330 = vadd.f32 %v307, %v322
    %v331 = vadd.f32 %v310, %v323
    %v332 = vadd.f32 %v313, %v324
    %v333 = vadd.f32 %v316, %v325
    %vm334 = vcmask 523264
    %v335 = vsel %vm334, %v326, -inf
    %336 = vmax.xlane.f32.xlu0 %v335
    %v337 = vpop.xlane.xlu0 %336
    %v338 = vsel %vm334, %v327, -inf
    %339 = vmax.xlane.f32.xlu0 %v338
    %v340 = vpop.xlane.xlu0 %339
    %v341 = vsel %vm334, %v328, -inf
    %342 = vmax.xlane.f32.xlu0 %v341
    %v343 = vpop.xlane.xlu0 %342
    %v344 = vsel %vm334, %v329, -inf
    %345 = vmax.xlane.f32.xlu0 %v344
    %v346 = vpop.xlane.xlu0 %345
    %v347 = vsel %vm334, %v330, -inf
    %348 = vmax.xlane.f32.xlu0 %v347
    %v349 = vpop.xlane.xlu0 %348
    %v350 = vsel %vm334, %v331, -inf
    %351 = vmax.xlane.f32.xlu0 %v350
    %v352 = vpop.xlane.xlu0 %351
    %v353 = vsel %vm334, %v332, -inf
    %354 = vmax.xlane.f32.xlu0 %v353
    %v355 = vpop.xlane.xlu0 %354
    %v356 = vsel %vm334, %v333, -inf
    %357 = vmax.xlane.f32.xlu0 %v356
    %v358 = vpop.xlane.xlu0 %357
    %v359 = vsub.f32 %v326, %v337
    %v360 = vsub.f32 %v327, %v340
    %v361 = vsub.f32 %v328, %v343
    %v362 = vsub.f32 %v329, %v346
    %v363 = vsub.f32 %v330, %v349
    %v364 = vsub.f32 %v331, %v352
    %v365 = vsub.f32 %v332, %v355
    %v366 = vsub.f32 %v333, %v358
    %v367 = vmul.f32 %v359, 1.442695
    %v368 = vpow.pop %v367
    %v369 = vmul.f32 %v360, 1.442695
    %v370 = vpow.pop %v369
    %v371 = vmul.f32 %v361, 1.442695
    %v372 = vpow.pop %v371
    %v373 = vmul.f32 %v362, 1.442695
    %v374 = vpow.pop %v373
    %v375 = vmul.f32 %v363, 1.442695
    %v376 = vpow.pop %v375
    %v377 = vmul.f32 %v364, 1.442695
    %v378 = vpow.pop %v377
    %v379 = vmul.f32 %v365, 1.442695
    %v380 = vpow.pop %v379
    %v381 = vmul.f32 %v366, 1.442695
    %v382 = vpow.pop %v381
    %v383 = vsel %vm334, %v368, 0.0
    %384 = vadd.xlane.f32.xlu0 %v383
    %v385 = vpop.xlane.xlu0 %384
    %v386 = vsel %vm334, %v370, 0.0
    %387 = vadd.xlane.f32.xlu0 %v386
    %v388 = vpop.xlane.xlu0 %387
    %v389 = vsel %vm334, %v372, 0.0
    %390 = vadd.xlane.f32.xlu0 %v389
    %v391 = vpop.xlane.xlu0 %390
    %v392 = vsel %vm334, %v374, 0.0
    %393 = vadd.xlane.f32.xlu0 %v392
    %v394 = vpop.xlane.xlu0 %393
    %v395 = vsel %vm334, %v376, 0.0
    %396 = vadd.xlane.f32.xlu0 %v395
    %v397 = vpop.xlane.xlu0 %396
    %v398 = vsel %vm334, %v378, 0.0
    %399 = vadd.xlane.f32.xlu0 %v398
    %v400 = vpop.xlane.xlu0 %399
    %v401 = vsel %vm334, %v380, 0.0
    %402 = vadd.xlane.f32.xlu0 %v401
    %v403 = vpop.xlane.xlu0 %402
    %v404 = vsel %vm334, %v382, 0.0
    %405 = vadd.xlane.f32.xlu0 %v404
    %v406 = vpop.xlane.xlu0 %405
    %v407 = vld [vmem:[%s4] sm:$0xff]
    %v408 = vld [vmem:[%s4 + $0x8] sm:$0xff]
    %v409 = vld [vmem:[%s4 + $0x10] sm:$0xff]
    %v410 = vld [vmem:[%s4 + $0x18] sm:$0xff]
    %v411 = vld [vmem:[%s4 + $0x20] sm:$0xff]
    %v412 = vld [vmem:[%s4 + $0x28] sm:$0xff]
    %v413 = vld [vmem:[%s4 + $0x30] sm:$0xff]
    %v414 = vld [vmem:[%s4 + $0x38] sm:$0xff]
    %v415 = vrcp.pop %v385
    %v416 = vmul.f32 %v385, %v415
    %v417 = vsub.f32 1.0, %v416
    %v418 = vmul.f32 %v415, %v417
    %v419 = vadd.f32 %v415, %v418
    %vm420 = vweird.f32 %v385
    %vm421 = vweird.f32 %v415
    %vm422 = vmor %vm420, %vm421
    %v423 = vsel %vm422, %v415, %v419
    %v424 = vand.u32 2147483647, %v385
    %vm425 = vcmp.eq.f32.partialorder %v424, 8.507059e+37
    %v426 = vand.u32 %v385, 2147483648
    %v427 = vor.u32 1.1754944e-38, %v426
    %v428 = vsel %vm425, %v427, %v423
    %v429 = vmul.f32 %v407, %v428
    %v430 = vrcp.pop %v388
    %v431 = vmul.f32 %v388, %v430
    %v432 = vsub.f32 1.0, %v431
    %v433 = vmul.f32 %v430, %v432
    %v434 = vadd.f32 %v430, %v433
    %vm435 = vweird.f32 %v388
    %vm436 = vweird.f32 %v430
    %vm437 = vmor %vm435, %vm436
    %v438 = vsel %vm437, %v430, %v434
    %v439 = vand.u32 2147483647, %v388
    %vm440 = vcmp.eq.f32.partialorder %v439, 8.507059e+37
    %v441 = vand.u32 %v388, 2147483648
    %v442 = vor.u32 1.1754944e-38, %v441
    %v443 = vsel %vm440, %v442, %v438
    %v444 = vmul.f32 %v408, %v443
    %v445 = vrcp.pop %v391
    %v446 = vmul.f32 %v391, %v445
    %v447 = vsub.f32 1.0, %v446
    %v448 = vmul.f32 %v445, %v447
    %v449 = vadd.f32 %v445, %v448
    %vm450 = vweird.f32 %v391
    %vm451 = vweird.f32 %v445
    %vm452 = vmor %vm450, %vm451
    %v453 = vsel %vm452, %v445, %v449
    %v454 = vand.u32 2147483647, %v391
    %vm455 = vcmp.eq.f32.partialorder %v454, 8.507059e+37
    %v456 = vand.u32 %v391, 2147483648
    %v457 = vor.u32 1.1754944e-38, %v456
    %v458 = vsel %vm455, %v457, %v453
    %v459 = vmul.f32 %v409, %v458
    %v460 = vrcp.pop %v394
    %v461 = vmul.f32 %v394, %v460
    %v462 = vsub.f32 1.0, %v461
    %v463 = vmul.f32 %v460, %v462
    %v464 = vadd.f32 %v460, %v463
    %vm465 = vweird.f32 %v394
    %vm466 = vweird.f32 %v460
    %vm467 = vmor %vm465, %vm466
    %v468 = vsel %vm467, %v460, %v464
    %v469 = vand.u32 2147483647, %v394
    %vm470 = vcmp.eq.f32.partialorder %v469, 8.507059e+37
    %v471 = vand.u32 %v394, 2147483648
    %v472 = vor.u32 1.1754944e-38, %v471
    %v473 = vsel %vm470, %v472, %v468
    %v474 = vmul.f32 %v410, %v473
    %v475 = vrcp.pop %v397
    %v476 = vmul.f32 %v397, %v475
    %v477 = vsub.f32 1.0, %v476
    %v478 = vmul.f32 %v475, %v477
    %v479 = vadd.f32 %v475, %v478
    %vm480 = vweird.f32 %v397
    %vm481 = vweird.f32 %v475
    %vm482 = vmor %vm480, %vm481
    %v483 = vsel %vm482, %v475, %v479
    %v484 = vand.u32 2147483647, %v397
    %vm485 = vcmp.eq.f32.partialorder %v484, 8.507059e+37
    %v486 = vand.u32 %v397, 2147483648
    %v487 = vor.u32 1.1754944e-38, %v486
    %v488 = vsel %vm485, %v487, %v483
    %v489 = vmul.f32 %v411, %v488
    %v490 = vrcp.pop %v400
    %v491 = vmul.f32 %v400, %v490
    %v492 = vsub.f32 1.0, %v491
    %v493 = vmul.f32 %v490, %v492
    %v494 = vadd.f32 %v490, %v493
    %vm495 = vweird.f32 %v400
    %vm496 = vweird.f32 %v490
    %vm497 = vmor %vm495, %vm496
    %v498 = vsel %vm497, %v490, %v494
    %v499 = vand.u32 2147483647, %v400
    %vm500 = vcmp.eq.f32.partialorder %v499, 8.507059e+37
    %v501 = vand.u32 %v400, 2147483648
    %v502 = vor.u32 1.1754944e-38, %v501
    %v503 = vsel %vm500, %v502, %v498
    %v504 = vmul.f32 %v412, %v503
    %v505 = vrcp.pop %v403
    %v506 = vmul.f32 %v403, %v505
    %v507 = vsub.f32 1.0, %v506
    %v508 = vmul.f32 %v505, %v507
    %v509 = vadd.f32 %v505, %v508
    %vm510 = vweird.f32 %v403
    %vm511 = vweird.f32 %v505
    %vm512 = vmor %vm510, %vm511
    %v513 = vsel %vm512, %v505, %v509
    %v514 = vand.u32 2147483647, %v403
    %vm515 = vcmp.eq.f32.partialorder %v514, 8.507059e+37
    %v516 = vand.u32 %v403, 2147483648
    %v517 = vor.u32 1.1754944e-38, %v516
    %v518 = vsel %vm515, %v517, %v513
    %v519 = vmul.f32 %v413, %v518
    %v520 = vrcp.pop %v406
    %v521 = vmul.f32 %v406, %v520
    %v522 = vsub.f32 1.0, %v521
    %v523 = vmul.f32 %v520, %v522
    %v524 = vadd.f32 %v520, %v523
    %vm525 = vweird.f32 %v406
    %vm526 = vweird.f32 %v520
    %vm527 = vmor %vm525, %vm526
    %v528 = vsel %vm527, %v520, %v524
    %v529 = vand.u32 2147483647, %v406
    %vm530 = vcmp.eq.f32.partialorder %v529, 8.507059e+37
    %v531 = vand.u32 %v406, 2147483648
    %v532 = vor.u32 1.1754944e-38, %v531
    %v533 = vsel %vm530, %v532, %v528
    %v534 = vmul.f32 %v414, %v533
    %536 = vset.pattern.permute.xlu0 0
    %537 = vperm.xlu0 %536, %v429
    %v538 = vpop.permute.xlu0 %537
    %541 = vset.pattern.permute.xlu0 0
    %542 = vperm.xlu0 %541, %v444
    %v543 = vpop.permute.xlu0 %542
    %546 = vset.pattern.permute.xlu0 0
    %547 = vperm.xlu0 %546, %v459
    %v548 = vpop.permute.xlu0 %547
    %551 = vset.pattern.permute.xlu0 0
    %552 = vperm.xlu0 %551, %v474
    %v553 = vpop.permute.xlu0 %552
    %556 = vset.pattern.permute.xlu0 0
    %557 = vperm.xlu0 %556, %v489
    %v558 = vpop.permute.xlu0 %557
    %561 = vset.pattern.permute.xlu0 0
    %562 = vperm.xlu0 %561, %v504
    %v563 = vpop.permute.xlu0 %562
    %566 = vset.pattern.permute.xlu0 0
    %567 = vperm.xlu0 %566, %v519
    %v568 = vpop.permute.xlu0 %567
    %571 = vset.pattern.permute.xlu0 0
    %572 = vperm.xlu0 %571, %v534
    %v573 = vpop.permute.xlu0 %572
    %v575 = vmul.f32 %v368, %v538
    %v576 = vmul.f32 %v370, %v543
    %v577 = vmul.f32 %v372, %v548
    %v578 = vmul.f32 %v374, %v553
    %v579 = vmul.f32 %v376, %v558
    %v580 = vmul.f32 %v378, %v563
    %v581 = vmul.f32 %v380, %v568
    %v582 = vmul.f32 %v382, %v573
    %v583 = vsel %vm334, %v575, 0.0
    %v584 = vsel %vm334, %v576, 0.0
    %v585 = vadd.f32 %v583, %v584
    %v586 = vsel %vm334, %v577, 0.0
    %v587 = vadd.f32 %v585, %v586
    %v588 = vsel %vm334, %v578, 0.0
    %v589 = vadd.f32 %v587, %v588
    %v590 = vsel %vm334, %v579, 0.0
    %v591 = vadd.f32 %v589, %v590
    %v592 = vsel %vm334, %v580, 0.0
    %v593 = vadd.f32 %v591, %v592
    %v594 = vsel %vm334, %v581, 0.0
    %v595 = vadd.f32 %v593, %v594
    %v596 = vsel %vm334, %v582, 0.0
    %v597 = vadd.f32 %v595, %v596
    %v598 = vrot.slane %v597, 4
    %v599 = vadd.f32 %v597, %v598
    %v600 = vrot.slane %v599, 2
    %v601 = vadd.f32 %v599, %v600
    %v602 = vrot.slane %v601, 1
    %v603 = vadd.f32 %v601, %v602
    %v604 = vld [vmem:[#allocation5] sm:$0xff]
    %v605 = vmul.f32 %v604, %v603
    %v606 = vpack.c.bf16 %v605, %v605
    %v612 = vsel %vm334, %v606, 0
    %614 = vmatpush.bf16.msra.mxu0 0
    %615 = vmatpush.bf16.msra.mxu0 0
    %616 = vmatpush.bf16.msra.mxu0 0
    %617 = vmatpush.bf16.msra.mxu0 0
    %618 = vmatpush.bf16.msra.mxu0 %v181
    %619 = vmatpush.bf16.msra.mxu0 %v180
    %620 = vmatpush.bf16.msra.mxu0 %v179
    %621 = vmatpush.bf16.msra.mxu0 %v178
    %622 = vmatmul.bf16.gmra.mxu0 %v612
    %v623 = vpop.f32.mrf.mxu0
    %v624 = vadd.f32 0.0, %v623
    %v625 = vpop.f32.mrf.mxu0
    %626 = vdwg.mxu0
    %v627 = vpack.c.bf16 %v624, %v624
    %v628 = vld [vmem:[#allocation8] sm:$0xf]
    %v629 = vld [vmem:[#allocation8 + $0x4] sm:$0xf]
    %v630 = vld [vmem:[#allocation8 + $0x8] sm:$0xf]
    %v631 = vld [vmem:[#allocation8 + $0xc] sm:$0xf]
    %v632 = vld [vmem:[%s8] sm:$0x1]
    %v634 = vperm.slane %v632, 0
    %v640 = vunpack.c.l.b16 %v628
    %v641 = vunpack.c.l.b16 %v629
    %v642 = vunpack.c.l.b16 %v630
    %v643 = vunpack.c.l.b16 %v631
    %v644 = vpack.c.b16 %v641, %v640
    %v645 = vpack.c.b16 %v643, %v642
    %v649 = vsel %vm202, %v627, 0
    %651 = vmatpush.bf16.msra.mxu0 0
    %652 = vmatpush.bf16.msra.mxu0 0
    %653 = vmatpush.bf16.msra.mxu0 0
    %654 = vmatpush.bf16.msra.mxu0 0
    %655 = vmatpush.bf16.msra.mxu0 0
    %656 = vmatpush.bf16.msra.mxu0 0
    %657 = vmatpush.bf16.msra.mxu0 %v645
    %658 = vmatpush.bf16.msra.mxu0 %v644
    %659 = vmatmul.bf16.gmra.mxu0 %v649
    %v660 = vpop.f32.mrf.mxu0
    %v661 = vadd.f32 %v634, %v660
    %v662 = vpop.f32.mrf.mxu0
    %663 = vdwg.mxu0
    %v664 = vsel %vm202, %v661, 0.0
    %665 = vadd.xlane.f32.xlu0 %v664
    %v666 = vpop.xlane.xlu0 %665
    %v667 = vrcp.pop 32.0
    %v668 = vmul.f32 32.0, %v667
    %v669 = vsub.f32 1.0, %v668
    %v670 = vmul.f32 %v667, %v669
    %v671 = vadd.f32 %v667, %v670
    %vm672 = vweird.f32 %v667
    %v673 = vsel %vm672, %v667, %v671
    %v674 = vmul.f32 %v666, %v673
    %v675 = vsub.f32 %v661, %v674
    %v676 = vmul.f32 %v675, %v675
    %v677 = vsel %vm202, %v676, 0.0
    %678 = vadd.xlane.f32.xlu0 %v677
    %v679 = vpop.xlane.xlu0 %678
    %v680 = vmul.f32 %v679, %v673
    %v681 = vadd.f32 %v680, 1e-05
    %v682 = vrsqrt.pop %v681
    %v683 = vmul.f32 %v682, %v681
    %v684 = vmul.f32 %v683, %v682
    %v685 = vmul.f32 0.5, %v684
    %v686 = vsub.f32 1.5, %v685
    %v687 = vmul.f32 %v682, %v686
    %vm688 = vweird.f32 %v681
    %vm689 = vweird.f32 %v682
    %vm690 = vmor %vm688, %vm689
    %v691 = vsel %vm690, %v682, %v687
    %v692 = vmul.f32 %v675, %v691
    %v693 = vld [vmem:[%s9] sm:$0x1]
    %v695 = vperm.slane %v693, 0
    %v697 = vmul.f32 %v692, %v695
    %v698 = vld [vmem:[%s10] sm:$0x1]
    %v700 = vperm.slane %v698, 0
    %v702 = vadd.f32 %v697, %v700
    %v703 = vpack.c.bf16 %v702, %v702
    %v704 = vld [vmem:[#allocation10] sm:$0xf]
    %v705 = vld [vmem:[#allocation10 + $0x4] sm:$0xf]
    %v706 = vld [vmem:[#allocation10 + $0x8] sm:$0xf]
    %v707 = vld [vmem:[#allocation10 + $0xc] sm:$0xf]
    %v708 = vld [vmem:[%s12] sm:$0x1]
    %v710 = vperm.slane %v708, 0
    %v716 = vunpack.c.l.b16 %v704
    %v717 = vunpack.c.l.b16 %v705
    %v718 = vunpack.c.l.b16 %v706
    %v719 = vunpack.c.l.b16 %v707
    %v720 = vpack.c.b16 %v717, %v716
    %v721 = vpack.c.b16 %v719, %v718
    %v725 = vsel %vm202, %v703, 0
    %727 = vmatpush.bf16.msra.mxu0 0
    %728 = vmatpush.bf16.msra.mxu0 0
    %729 = vmatpush.bf16.msra.mxu0 0
    %730 = vmatpush.bf16.msra.mxu0 0
    %731 = vmatpush.bf16.msra.mxu0 0
    %732 = vmatpush.bf16.msra.mxu0 0
    %733 = vmatpush.bf16.msra.mxu0 %v721
    %734 = vmatpush.bf16.msra.mxu0 %v720
    %735 = vmatmul.bf16.gmra.mxu0 %v725
    %v736 = vpop.f32.mrf.mxu0
    %v737 = vadd.f32 %v710, %v736
    %v738 = vpop.f32.mrf.mxu0
    %739 = vdwg.mxu0
    %v740 = vmax.f32 %v737, 0.0
    %v741 = vpack.c.bf16 %v740, %v740
    %v742 = vld [vmem:[#allocation11] sm:$0xf]
    %v743 = vld [vmem:[#allocation11 + $0x4] sm:$0xf]
    %v744 = vld [vmem:[#allocation11 + $0x8] sm:$0xf]
    %v745 = vld [vmem:[#allocation11 + $0xc] sm:$0xf]
    %v746 = vld [vmem:[#allocation11 + $0x10] sm:$0xf]
    %v747 = vld [vmem:[#allocation11 + $0x14] sm:$0xf]
    %v748 = vld [vmem:[#allocation11 + $0x18] sm:$0xf]
    %v749 = vld [vmem:[#allocation11 + $0x1c] sm:$0xf]
    %v750 = vld [vmem:[%s14] sm:$0x1]
    %v752 = vperm.slane %v750, 0
    %v762 = vunpack.c.l.b16 %v742
    %v763 = vunpack.c.l.b16 %v743
    %v764 = vunpack.c.l.b16 %v744
    %v765 = vunpack.c.l.b16 %v745
    %v766 = vunpack.c.l.b16 %v746
    %v767 = vunpack.c.l.b16 %v747
    %v768 = vunpack.c.l.b16 %v748
    %v769 = vunpack.c.l.b16 %v749
    %v770 = vpack.c.b16 %v763, %v762
    %v771 = vpack.c.b16 %v765, %v764
    %v772 = vpack.c.b16 %v767, %v766
    %v773 = vpack.c.b16 %v769, %v768
    %v779 = vsel %vm334, %v741, 0
    %781 = vmatpush.bf16.msra.mxu0 0
    %782 = vmatpush.bf16.msra.mxu0 0
    %783 = vmatpush.bf16.msra.mxu0 0
    %784 = vmatpush.bf16.msra.mxu0 0
    %785 = vmatpush.bf16.msra.mxu0 %v773
    %786 = vmatpush.bf16.msra.mxu0 %v772
    %787 = vmatpush.bf16.msra.mxu0 %v771
    %788 = vmatpush.bf16.msra.mxu0 %v770
    %789 = vmatmul.bf16.gmra.mxu0 %v779
    %v790 = vpop.f32.mrf.mxu0
    %v791 = vadd.f32 %v752, %v790
    %v792 = vpop.f32.mrf.mxu0
    %793 = vdwg.mxu0
    %794 = vst [vmem:[#allocation13] sm:$0xff] %v791
    // Predicated region
    $region86: #{tpu_custom_call.1} parent=1 // pred_check
      _
    $region87: #{tpu_custom_call.1} parent=1 // pred_check_branch
      %796 = sbr.rel (0) target = $region89
    $region88: #{tpu_custom_call.1} parent=1 // pred_region
      %798 = vsyncadd [#allocation4], 0
      %s800 = sshll.u32 [#allocation13], 4
      %s801 = int_to_ptr.vmem [resolvable:$true] %s800
      %s802 = sshll.u32 %s15, 4
      %s803 = int_to_ptr.hbm [resolvable:$true] %s802
      %805 = dma.vmem_to_hbm [thread:$0]  %s801, 128, %s803, [#allocation4]
    $region89: #{tpu_custom_call.1} parent=1 // pred_fallthru
      _
    // Predicated region
    $region90: #{tpu_custom_call.1} parent=1 // pred_check
      _
    $region91: #{tpu_custom_call.1} parent=1 // pred_check_branch
      %807 = sbr.rel (0) target = $region93
    $region92: #{tpu_custom_call.1} parent=1 // pred_region
      %809 = dma.done [#allocation4], 128
    $region93: #{tpu_custom_call.1} parent=1 // pred_fallthru
      _
    %810 = vsyncpa [#allocation3], 1
    %811 = vsyncpa [#allocation6], 1
    %812 = vsyncpa [#allocation9], 1
    %813 = vsyncpa [#allocation12], 1
    %814 = vsyncpa [#allocation4], 1

// kernel: tpu_custom_call.1
$region0: #{tpu_custom_call.1}
  #allocation0 [shape = 'u32[]', space=smem, size = 0x4, offset = 0x4, fixed_abs, tag = 'smem constant byte address 0x4 - core index']
  #allocation1 [shape = 'u32[72,128]{1,0:T(1,128)}', space=vmem, size = 0x9000, scoped, tag = 'internal scratch']
  %s0 = inlined_call_operand.hbm [shape: bf16[8,8,32], index: 0, kind: input, shape index: {}]
  %s1 = inlined_call_operand.vmem [shape: f32[1,1,64], index: 1, kind: input, shape index: {}]
  %s2 = inlined_call_operand.vmem [shape: f32[64,64], index: 2, kind: input, shape index: {}]
  %s3 = inlined_call_operand.hbm [shape: f32[8,64], index: 3, kind: input, shape index: {}]
  %s4 = inlined_call_operand.vmem [shape: f32[64,1], index: 4, kind: input, shape index: {}]
  %s5 = inlined_call_operand.hbm [shape: bf16[32,256], index: 5, kind: input, shape index: {}]
  %s6 = inlined_call_operand.vmem [shape: f32[1,256], index: 6, kind: input, shape index: {}]
  %s7 = inlined_call_operand.hbm [shape: bf16[32,32], index: 7, kind: input, shape index: {}]
  %s8 = inlined_call_operand.vmem [shape: f32[1,32], index: 8, kind: input, shape index: {}]
  %s9 = inlined_call_operand.vmem [shape: f32[1,32], index: 9, kind: input, shape index: {}]
  %s10 = inlined_call_operand.vmem [shape: f32[1,32], index: 10, kind: input, shape index: {}]
  %s11 = inlined_call_operand.hbm [shape: bf16[32,64], index: 11, kind: input, shape index: {}]
  %s12 = inlined_call_operand.vmem [shape: f32[1,64], index: 12, kind: input, shape index: {}]
  %s13 = inlined_call_operand.hbm [shape: bf16[64,128], index: 13, kind: input, shape index: {}]
  %s14 = inlined_call_operand.vmem [shape: f32[1,128], index: 14, kind: input, shape index: {}]
  %s15 = inlined_call_operand.hbm [shape: f32[8,128], index: 15, kind: output, shape index: {}]
  %s16 = sld [smem:[#allocation0]]
  $region94: #{tpu_custom_call.1} parent=0
    _
  %s18 = ssub.s32 1, %s16
  %s19 = scalar_select 0, %s18, %s16
  $region1: #{tpu_custom_call.1} parent=0
    #allocation2 [shape = 'u8[16384]{0}', space=vmem, size = 0x4000, scoped, tag = 'input window, operand 0, single buffered']
    #allocation3 [shape = 's32[1]{0}', space=sflag, size = 0x4, scoped, tag = 'scoped memory for tpu_custom_call.1']
    #allocation4 [shape = 's32[1]{0}', space=sflag, size = 0x4, scoped, tag = 'scoped memory for tpu_custom_call.1']
    #allocation5 [shape = 'u8[4096]{0}', space=vmem, size = 0x1000, scoped, tag = 'input window, operand 3, single buffered']
    #allocation6 [shape = 's32[1]{0}', space=sflag, size = 0x4, scoped, tag = 'scoped memory for tpu_custom_call.1']
    #allocation7 [shape = 'u8[16384]{0}', space=vmem, size = 0x4000, scoped, tag = 'input window, operand 5, single buffered']
    #allocation8 [shape = 'u8[8192]{0}', space=vmem, size = 0x2000, scoped, tag = 'input window, operand 7, single buffered']
    #allocation9 [shape = 's32[1]{0}', space=sflag, size = 0x4, scoped, tag = 'scoped memory for tpu_custom_call.1']
    #allocation10 [shape = 'u8[8192]{0}', space=vmem, size = 0x2000, scoped, tag = 'input window, operand 11, single buffered']
    #allocation11 [shape = 'u8[16384]{0}', space=vmem, size = 0x4000, scoped, tag = 'input window, operand 13, single buffered']
    #allocation12 [shape = 's32[1]{0}', space=sflag, size = 0x4, scoped, tag = 'scoped memory for tpu_custom_call.1']
    #allocation13 [shape = 'u8[4096]{0}', space=vmem, size = 0x1000, scoped, tag = 'output window, operand 0, single buffered']
    %20 = vsyncpa [#allocation3], 0
    %21 = vsyncpa [#allocation6], 0
    %22 = vsyncpa [#allocation9], 0
    %23 = vsyncpa [#allocation12], 0
    %24 = vsyncpa [#allocation4], 0
    // Predicated region
    $region2: #{tpu_custom_call.1} parent=1 // pred_check
      _
    $region3: #{tpu_custom_call.1} parent=1 // pred_check_branch
      %26 = sbr.rel (0) target = $region5
    $region4: #{tpu_custom_call.1} parent=1 // pred_region
      %28 = vsyncadd [#allocation3], 0
      %s29 = sshll.u32 %s0, 4
      %s30 = int_to_ptr.hbm [resolvable:$true] %s29
      %s31 = sshll.u32 [#allocation2], 4
      %s32 = int_to_ptr.vmem [resolvable:$true] %s31
      %37 = dma.hbm_to_vmem [thread:$0]  %s30, 512, %s32, [#allocation3], 64, 64, 4
    $region5: #{tpu_custom_call.1} parent=1 // pred_fallthru
      _
    // Predicated region
    $region6: #{tpu_custom_call.1} parent=1 // pred_check
      _
    $region7: #{tpu_custom_call.1} parent=1 // pred_check_branch
      %39 = sbr.rel (0) target = $region9
    $region8: #{tpu_custom_call.1} parent=1 // pred_region
      _
    $region9: #{tpu_custom_call.1} parent=1 // pred_fallthru
      _
    // Predicated region
    $region10: #{tpu_custom_call.1} parent=1 // pred_check
      _
    $region11: #{tpu_custom_call.1} parent=1 // pred_check_branch
      %41 = sbr.rel (0) target = $region13
    $region12: #{tpu_custom_call.1} parent=1 // pred_region
      _
    $region13: #{tpu_custom_call.1} parent=1 // pred_fallthru
      _
    // Predicated region
    $region14: #{tpu_custom_call.1} parent=1 // pred_check
      _
    $region15: #{tpu_custom_call.1} parent=1 // pred_check_branch
      %43 = sbr.rel (0) target = $region17
    $region16: #{tpu_custom_call.1} parent=1 // pred_region
      %45 = vsyncadd [#allocation6], 0
      %s47 = sshll.u32 %s3, 4
      %s48 = int_to_ptr.hbm [resolvable:$true] %s47
      %s49 = sshll.u32 [#allocation5], 4
      %s50 = int_to_ptr.vmem [resolvable:$true] %s49
      %52 = dma.hbm_to_vmem [thread:$0]  %s48, 128, %s50, [#allocation6]
    $region17: #{tpu_custom_call.1} parent=1 // pred_fallthru
      _
    // Predicated region
    $region18: #{tpu_custom_call.1} parent=1 // pred_check
      _
    $region19: #{tpu_custom_call.1} parent=1 // pred_check_branch
      %54 = sbr.rel (0) target = $region21
    $region20: #{tpu_custom_call.1} parent=1 // pred_region
      _
    $region21: #{tpu_custom_call.1} parent=1 // pred_fallthru
      _
    // Predicated region
    $region22: #{tpu_custom_call.1} parent=1 // pred_check
      _
    $region23: #{tpu_custom_call.1} parent=1 // pred_check_branch
      %56 = sbr.rel (0) target = $region25
    $region24: #{tpu_custom_call.1} parent=1 // pred_region
      %58 = vsyncadd [#allocation6], 0
      %s59 = sshll.u32 %s5, 4
      %s60 = int_to_ptr.hbm [resolvable:$true] %s59
      %s61 = sshll.u32 [#allocation7], 4
      %s62 = int_to_ptr.vmem [resolvable:$true] %s61
      %67 = dma.hbm_to_vmem [thread:$0]  %s60, 512, %s62, [#allocation6], 128, 128, 8
    $region25: #{tpu_custom_call.1} parent=1 // pred_fallthru
      _
    // Predicated region
    $region26: #{tpu_custom_call.1} parent=1 // pred_check
      _
    $region27: #{tpu_custom_call.1} parent=1 // pred_check_branch
      %69 = sbr.rel (0) target = $region29
    $region28: #{tpu_custom_call.1} parent=1 // pred_region
      _
    $region29: #{tpu_custom_call.1} parent=1 // pred_fallthru
      _
    // Predicated region
    $region30: #{tpu_custom_call.1} parent=1 // pred_check
      _
    $region31: #{tpu_custom_call.1} parent=1 // pred_check_branch
      %71 = sbr.rel (0) target = $region33
    $region32: #{tpu_custom_call.1} parent=1 // pred_region
      %73 = vsyncadd [#allocation9], 0
      %s74 = sshll.u32 %s7, 4
      %s75 = int_to_ptr.hbm [resolvable:$true] %s74
      %s76 = sshll.u32 [#allocation8], 4
      %s77 = int_to_ptr.vmem [resolvable:$true] %s76
      %82 = dma.hbm_to_vmem [thread:$0]  %s75, 256, %s77, [#allocation9], 64, 64, 4
    $region33: #{tpu_custom_call.1} parent=1 // pred_fallthru
      _
    // Predicated region
    $region34: #{tpu_custom_call.1} parent=1 // pred_check
      _
    $region35: #{tpu_custom_call.1} parent=1 // pred_check_branch
      %84 = sbr.rel (0) target = $region37
    $region36: #{tpu_custom_call.1} parent=1 // pred_region
      _
    $region37: #{tpu_custom_call.1} parent=1 // pred_fallthru
      _
    // Predicated region
    $region38: #{tpu_custom_call.1} parent=1 // pred_check
      _
    $region39: #{tpu_custom_call.1} parent=1 // pred_check_branch
      %86 = sbr.rel (0) target = $region41
    $region40: #{tpu_custom_call.1} parent=1 // pred_region
      _
    $region41: #{tpu_custom_call.1} parent=1 // pred_fallthru
      _
    // Predicated region
    $region42: #{tpu_custom_call.1} parent=1 // pred_check
      _
    $region43: #{tpu_custom_call.1} parent=1 // pred_check_branch
      %88 = sbr.rel (0) target = $region45
    $region44: #{tpu_custom_call.1} parent=1 // pred_region
      _
    $region45: #{tpu_custom_call.1} parent=1 // pred_fallthru
      _
    // Predicated region
    $region46: #{tpu_custom_call.1} parent=1 // pred_check
      _
    $region47: #{tpu_custom_call.1} parent=1 // pred_check_branch
      %90 = sbr.rel (0) target = $region49
    $region48: #{tpu_custom_call.1} parent=1 // pred_region
      %92 = vsyncadd [#allocation9], 0
      %s93 = sshll.u32 %s11, 4
      %s94 = int_to_ptr.hbm [resolvable:$true] %s93
      %s95 = sshll.u32 [#allocation10], 4
      %s96 = int_to_ptr.vmem [resolvable:$true] %s95
      %101 = dma.hbm_to_vmem [thread:$0]  %s94, 256, %s96, [#allocation9], 64, 64, 4
    $region49: #{tpu_custom_call.1} parent=1 // pred_fallthru
      _
    // Predicated region
    $region50: #{tpu_custom_call.1} parent=1 // pred_check
      _
    $region51: #{tpu_custom_call.1} parent=1 // pred_check_branch
      %103 = sbr.rel (0) target = $region53
    $region52: #{tpu_custom_call.1} parent=1 // pred_region
      _
    $region53: #{tpu_custom_call.1} parent=1 // pred_fallthru
      _
    // Predicated region
    $region54: #{tpu_custom_call.1} parent=1 // pred_check
      _
    $region55: #{tpu_custom_call.1} parent=1 // pred_check_branch
      %105 = sbr.rel (0) target = $region57
    $region56: #{tpu_custom_call.1} parent=1 // pred_region
      %107 = vsyncadd [#allocation12], 0
      %s108 = sshll.u32 %s13, 4
      %s109 = int_to_ptr.hbm [resolvable:$true] %s108
      %s110 = sshll.u32 [#allocation11], 4
      %s111 = int_to_ptr.vmem [resolvable:$true] %s110
      %116 = dma.hbm_to_vmem [thread:$0]  %s109, 512, %s111, [#allocation12], 64, 64, 4
    $region57: #{tpu_custom_call.1} parent=1 // pred_fallthru
      _
    // Predicated region
    $region58: #{tpu_custom_call.1} parent=1 // pred_check
      _
    $region59: #{tpu_custom_call.1} parent=1 // pred_check_branch
      %118 = sbr.rel (0) target = $region61
    $region60: #{tpu_custom_call.1} parent=1 // pred_region
      _
    $region61: #{tpu_custom_call.1} parent=1 // pred_fallthru
      _
    // Predicated region
    $region62: #{tpu_custom_call.1} parent=1 // pred_check
      _
    $region63: #{tpu_custom_call.1} parent=1 // pred_check_branch
      %120 = sbr.rel (0) target = $region65
    $region64: #{tpu_custom_call.1} parent=1 // pred_region
      %122 = dma.done [#allocation3], 512
    $region65: #{tpu_custom_call.1} parent=1 // pred_fallthru
      _
    // Predicated region
    $region66: #{tpu_custom_call.1} parent=1 // pred_check
      _
    $region67: #{tpu_custom_call.1} parent=1 // pred_check_branch
      %124 = sbr.rel (0) target = $region69
    $region68: #{tpu_custom_call.1} parent=1 // pred_region
      %126 = dma.done [#allocation6], 128
    $region69: #{tpu_custom_call.1} parent=1 // pred_fallthru
      _
    // Predicated region
    $region70: #{tpu_custom_call.1} parent=1 // pred_check
      _
    $region71: #{tpu_custom_call.1} parent=1 // pred_check_branch
      %128 = sbr.rel (0) target = $region73
    $region72: #{tpu_custom_call.1} parent=1 // pred_region
      %130 = dma.done [#allocation6], 512
    $region73: #{tpu_custom_call.1} parent=1 // pred_fallthru
      _
    // Predicated region
    $region74: #{tpu_custom_call.1} parent=1 // pred_check
      _
    $region75: #{tpu_custom_call.1} parent=1 // pred_check_branch
      %132 = sbr.rel (0) target = $region77
    $region76: #{tpu_custom_call.1} parent=1 // pred_region
      %134 = dma.done [#allocation9], 256
    $region77: #{tpu_custom_call.1} parent=1 // pred_fallthru
      _
    // Predicated region
    $region78: #{tpu_custom_call.1} parent=1 // pred_check
      _
    $region79: #{tpu_custom_call.1} parent=1 // pred_check_branch
      %136 = sbr.rel (0) target = $region81
    $region80: #{tpu_custom_call.1} parent=1 // pred_region
      %138 = dma.done [#allocation9], 256
    $region81: #{tpu_custom_call.1} parent=1 // pred_fallthru
      _
    // Predicated region
    $region82: #{tpu_custom_call.1} parent=1 // pred_check
      _
    $region83: #{tpu_custom_call.1} parent=1 // pred_check_branch
      %140 = sbr.rel (0) target = $region85
    $region84: #{tpu_custom_call.1} parent=1 // pred_region
      %142 = dma.done [#allocation12], 512
    $region85: #{tpu_custom_call.1} parent=1 // pred_fallthru
      _
    %v144 = vld [vmem:[#allocation2] sm:$0xf]
    %v145 = vld [vmem:[#allocation2 + $0x4] sm:$0xf]
    %v146 = vld [vmem:[#allocation2 + $0x8] sm:$0xf]
    %v147 = vld [vmem:[#allocation2 + $0xc] sm:$0xf]
    %v148 = vld [vmem:[#allocation2 + $0x10] sm:$0xf]
    %v149 = vld [vmem:[#allocation2 + $0x14] sm:$0xf]
    %v150 = vld [vmem:[#allocation2 + $0x18] sm:$0xf]
    %v151 = vld [vmem:[#allocation2 + $0x1c] sm:$0xf]
    %v152 = vld [vmem:[#allocation7] sm:$0xff]
    %v153 = vld [vmem:[#allocation7 + $0x8] sm:$0xff]
    %v154 = vld [vmem:[#allocation7 + $0x10] sm:$0xff]
    %v155 = vld [vmem:[#allocation7 + $0x18] sm:$0xff]
    %v156 = vld [vmem:[%s6] sm:$0x3]
    %v158 = vperm.slane %v156, 0
    %v159 = vperm.slane %v156, 1
    %v170 = vunpack.c.l.b16 %v144
    %v171 = vunpack.c.l.b16 %v145
    %v172 = vunpack.c.l.b16 %v146
    %v173 = vunpack.c.l.b16 %v147
    %v174 = vunpack.c.l.b16 %v148
    %v175 = vunpack.c.l.b16 %v149
    %v176 = vunpack.c.l.b16 %v150
    %v177 = vunpack.c.l.b16 %v151
    %v178 = vpack.c.b16 %v171, %v170
    %v179 = vpack.c.b16 %v173, %v172
    %v180 = vpack.c.b16 %v175, %v174
    %v181 = vpack.c.b16 %v177, %v176
    %v186 = vunpack.c.l.b16 %v152
    %v187 = vunpack.c.h.b16 %v152
    %v188 = vunpack.c.l.b16 %v153
    %v189 = vunpack.c.h.b16 %v153
    %v190 = vunpack.c.l.b16 %v154
    %v191 = vunpack.c.h.b16 %v154
    %v192 = vunpack.c.l.b16 %v155
    %v193 = vunpack.c.h.b16 %v155
    %v194 = vpack.c.b16 %v188, %v186
    %v195 = vpack.c.b16 %v189, %v187
    %v196 = vpack.c.b16 %v192, %v190
    %v197 = vpack.c.b16 %v193, %v191
    %vm202 = vcmask 261120
    %v204 = vsel %vm202, %v178, 0
    %v207 = vsel %vm202, %v179, 0
    %v210 = vsel %vm202, %v180, 0
    %v213 = vsel %vm202, %v181, 0
    %215 = vmatpush.bf16.msra.mxu0 0
    %216 = vmatpush.bf16.msra.mxu0 0
    %217 = vmatpush.bf16.msra.mxu0 0
    %218 = vmatpush.bf16.msra.mxu0 0
    %219 = vmatpush.bf16.msra.mxu0 0
    %220 = vmatpush.bf16.msra.mxu0 0
    %221 = vmatpush.bf16.msra.mxu0 %v196
    %222 = vmatpush.bf16.msra.mxu0 %v194
    %223 = vmatmul.bf16.gmra.mxu0 %v204
    %v224 = vpop.f32.mrf.mxu0
    %v225 = vadd.f32 %v158, %v224
    %v226 = vpop.f32.mrf.mxu0
    %v227 = vadd.f32 %v158, %v226
    %228 = vmatmul.bf16.gmra.mxu0 %v207
    %v229 = vpop.f32.mrf.mxu0
    %v230 = vadd.f32 %v158, %v229
    %v231 = vpop.f32.mrf.mxu0
    %v232 = vadd.f32 %v158, %v231
    %233 = vmatmul.bf16.gmra.mxu0 %v210
    %v234 = vpop.f32.mrf.mxu0
    %v235 = vadd.f32 %v158, %v234
    %v236 = vpop.f32.mrf.mxu0
    %v237 = vadd.f32 %v158, %v236
    %238 = vmatmul.bf16.gmra.mxu0 %v213
    %v239 = vpop.f32.mrf.mxu0
    %v240 = vadd.f32 %v158, %v239
    %v241 = vpop.f32.mrf.mxu0
    %v242 = vadd.f32 %v158, %v241
    %243 = vdwg.mxu0
    %244 = vmatpush.bf16.msra.mxu0 0
    %245 = vmatpush.bf16.msra.mxu0 0
    %246 = vmatpush.bf16.msra.mxu0 0
    %247 = vmatpush.bf16.msra.mxu0 0
    %248 = vmatpush.bf16.msra.mxu0 0
    %249 = vmatpush.bf16.msra.mxu0 0
    %250 = vmatpush.bf16.msra.mxu0 %v197
    %251 = vmatpush.bf16.msra.mxu0 %v195
    %252 = vmatmul.bf16.gmra.mxu0 %v204
    %v253 = vpop.f32.mrf.mxu0
    %v254 = vadd.f32 %v159, %v253
    %v255 = vpop.f32.mrf.mxu0
    %v256 = vadd.f32 %v159, %v255
    %257 = vmatmul.bf16.gmra.mxu0 %v207
    %v258 = vpop.f32.mrf.mxu0
    %v259 = vadd.f32 %v159, %v258
    %v260 = vpop.f32.mrf.mxu0
    %v261 = vadd.f32 %v159, %v260
    %262 = vmatmul.bf16.gmra.mxu0 %v210
    %v263 = vpop.f32.mrf.mxu0
    %v264 = vadd.f32 %v159, %v263
    %v265 = vpop.f32.mrf.mxu0
    %v266 = vadd.f32 %v159, %v265
    %267 = vmatmul.bf16.gmra.mxu0 %v213
    %v268 = vpop.f32.mrf.mxu0
    %v269 = vadd.f32 %v159, %v268
    %v270 = vpop.f32.mrf.mxu0
    %v271 = vadd.f32 %v159, %v270
    %272 = vdwg.mxu0
    %v273 = vld [vmem:[%s1] sm:$0x1]
    %v275 = vperm.slane %v273, 0
    %277 = vmatpush.xpose.msra.mxu0 0.0
    %278 = vmatpush.xpose.msra.mxu0 0.0
    %279 = vmatpush.xpose.msra.mxu0 0.0
    %280 = vmatpush.xpose.msra.mxu0 0.0
    %281 = vmatpush.xpose.msra.mxu0 0.0
    %282 = vmatpush.xpose.msra.mxu0 0.0
    %283 = vmatpush.xpose.msra.mxu0 0.0
    %284 = vmatpush.xpose.msra.mxu0 0.0
    %285 = vmatpush.xpose.msra.mxu0 %v271
    %286 = vmatpush.xpose.msra.mxu0 %v269
    %287 = vmatpush.xpose.msra.mxu0 %v266
    %288 = vmatpush.xpose.msra.mxu0 %v264
    %289 = vmatpush.xpose.msra.mxu0 %v261
    %290 = vmatpush.xpose.msra.mxu0 %v259
    %291 = vmatpush.xpose.msra.mxu0 %v256
    %292 = vmatpush.xpose.msra.mxu0 %v254
    %293 = vmatmul.f32.gmra.mxu0 %v225
    %v294 = vpop.f32.mrf.mxu0
    %v295 = vadd.f32 %v275, %v294
    %296 = vmatmul.f32.gmra.mxu0 %v227
    %v297 = vpop.f32.mrf.mxu0
    %v298 = vadd.f32 %v275, %v297
    %299 = vmatmul.f32.gmra.mxu0 %v230
    %v300 = vpop.f32.mrf.mxu0
    %v301 = vadd.f32 %v275, %v300
    %302 = vmatmul.f32.gmra.mxu0 %v232
    %v303 = vpop.f32.mrf.mxu0
    %v304 = vadd.f32 %v275, %v303
    %305 = vmatmul.f32.gmra.mxu0 %v235
    %v306 = vpop.f32.mrf.mxu0
    %v307 = vadd.f32 %v275, %v306
    %308 = vmatmul.f32.gmra.mxu0 %v237
    %v309 = vpop.f32.mrf.mxu0
    %v310 = vadd.f32 %v275, %v309
    %311 = vmatmul.f32.gmra.mxu0 %v240
    %v312 = vpop.f32.mrf.mxu0
    %v313 = vadd.f32 %v275, %v312
    %314 = vmatmul.f32.gmra.mxu0 %v242
    %v315 = vpop.f32.mrf.mxu0
    %v316 = vadd.f32 %v275, %v315
    %317 = vdwg.mxu0
    %v318 = vld [vmem:[%s2] sm:$0xff]
    %v319 = vld [vmem:[%s2 + $0x8] sm:$0xff]
    %v320 = vld [vmem:[%s2 + $0x10] sm:$0xff]
    %v321 = vld [vmem:[%s2 + $0x18] sm:$0xff]
    %v322 = vld [vmem:[%s2 + $0x20] sm:$0xff]
    %v323 = vld [vmem:[%s2 + $0x28] sm:$0xff]
    %v324 = vld [vmem:[%s2 + $0x30] sm:$0xff]
    %v325 = vld [vmem:[%s2 + $0x38] sm:$0xff]
    %v326 = vadd.f32 %v295, %v318
    %v327 = vadd.f32 %v298, %v319
    %v328 = vadd.f32 %v301, %v320
    %v329 = vadd.f32 %v304, %v321
    %v330 = vadd.f32 %v307, %v322
    %v331 = vadd.f32 %v310, %v323
    %v332 = vadd.f32 %v313, %v324
    %v333 = vadd.f32 %v316, %v325
    %vm334 = vcmask 523264
    %v335 = vsel %vm334, %v326, -inf
    %336 = vmax.xlane.f32.xlu0 %v335
    %v337 = vpop.xlane.xlu0 %336
    %v338 = vsel %vm334, %v327, -inf
    %339 = vmax.xlane.f32.xlu0 %v338
    %v340 = vpop.xlane.xlu0 %339
    %v341 = vsel %vm334, %v328, -inf
    %342 = vmax.xlane.f32.xlu0 %v341
    %v343 = vpop.xlane.xlu0 %342
    %v344 = vsel %vm334, %v329, -inf
    %345 = vmax.xlane.f32.xlu0 %v344
    %v346 = vpop.xlane.xlu0 %345
    %v347 = vsel %vm334, %v330, -inf
    %348 = vmax.xlane.f32.xlu0 %v347
    %v349 = vpop.xlane.xlu0 %348
    %v350 = vsel %vm334, %v331, -inf
    %351 = vmax.xlane.f32.xlu0 %v350
    %v352 = vpop.xlane.xlu0 %351
    %v353 = vsel %vm334, %v332, -inf
    %354 = vmax.xlane.f32.xlu0 %v353
    %v355 = vpop.xlane.xlu0 %354
    %v356 = vsel %vm334, %v333, -inf
    %357 = vmax.xlane.f32.xlu0 %v356
    %v358 = vpop.xlane.xlu0 %357
    %v359 = vsub.f32 %v326, %v337
    %v360 = vsub.f32 %v327, %v340
    %v361 = vsub.f32 %v328, %v343
    %v362 = vsub.f32 %v329, %v346
    %v363 = vsub.f32 %v330, %v349
    %v364 = vsub.f32 %v331, %v352
    %v365 = vsub.f32 %v332, %v355
    %v366 = vsub.f32 %v333, %v358
    %v367 = vmul.f32 %v359, 1.442695
    %v368 = vpow.pop %v367
    %v369 = vmul.f32 %v360, 1.442695
    %v370 = vpow.pop %v369
    %v371 = vmul.f32 %v361, 1.442695
    %v372 = vpow.pop %v371
    %v373 = vmul.f32 %v362, 1.442695
    %v374 = vpow.pop %v373
    %v375 = vmul.f32 %v363, 1.442695
    %v376 = vpow.pop %v375
    %v377 = vmul.f32 %v364, 1.442695
    %v378 = vpow.pop %v377
    %v379 = vmul.f32 %v365, 1.442695
    %v380 = vpow.pop %v379
    %v381 = vmul.f32 %v366, 1.442695
    %v382 = vpow.pop %v381
    %v383 = vsel %vm334, %v368, 0.0
    %384 = vadd.xlane.f32.xlu0 %v383
    %v385 = vpop.xlane.xlu0 %384
    %v386 = vsel %vm334, %v370, 0.0
    %387 = vadd.xlane.f32.xlu0 %v386
    %v388 = vpop.xlane.xlu0 %387
    %v389 = vsel %vm334, %v372, 0.0
    %390 = vadd.xlane.f32.xlu0 %v389
    %v391 = vpop.xlane.xlu0 %390
    %v392 = vsel %vm334, %v374, 0.0
    %393 = vadd.xlane.f32.xlu0 %v392
    %v394 = vpop.xlane.xlu0 %393
    %v395 = vsel %vm334, %v376, 0.0
    %396 = vadd.xlane.f32.xlu0 %v395
    %v397 = vpop.xlane.xlu0 %396
    %v398 = vsel %vm334, %v378, 0.0
    %399 = vadd.xlane.f32.xlu0 %v398
    %v400 = vpop.xlane.xlu0 %399
    %v401 = vsel %vm334, %v380, 0.0
    %402 = vadd.xlane.f32.xlu0 %v401
    %v403 = vpop.xlane.xlu0 %402
    %v404 = vsel %vm334, %v382, 0.0
    %405 = vadd.xlane.f32.xlu0 %v404
    %v406 = vpop.xlane.xlu0 %405
    %v407 = vld [vmem:[%s4] sm:$0xff]
    %v408 = vld [vmem:[%s4 + $0x8] sm:$0xff]
    %v409 = vld [vmem:[%s4 + $0x10] sm:$0xff]
    %v410 = vld [vmem:[%s4 + $0x18] sm:$0xff]
    %v411 = vld [vmem:[%s4 + $0x20] sm:$0xff]
    %v412 = vld [vmem:[%s4 + $0x28] sm:$0xff]
    %v413 = vld [vmem:[%s4 + $0x30] sm:$0xff]
    %v414 = vld [vmem:[%s4 + $0x38] sm:$0xff]
    %v415 = vrcp.pop %v385
    %v416 = vmul.f32 %v385, %v415
    %v417 = vsub.f32 1.0, %v416
    %v418 = vmul.f32 %v415, %v417
    %v419 = vadd.f32 %v415, %v418
    %vm420 = vweird.f32 %v385
    %vm421 = vweird.f32 %v415
    %vm422 = vmor %vm420, %vm421
    %v423 = vsel %vm422, %v415, %v419
    %v424 = vand.u32 2147483647, %v385
    %vm425 = vcmp.eq.f32.partialorder %v424, 8.507059e+37
    %v426 = vand.u32 %v385, 2147483648
    %v427 = vor.u32 1.1754944e-38, %v426
    %v428 = vsel %vm425, %v427, %v423
    %v429 = vmul.f32 %v407, %v428
    %v430 = vrcp.pop %v388
    %v431 = vmul.f32 %v388, %v430
    %v432 = vsub.f32 1.0, %v431
    %v433 = vmul.f32 %v430, %v432
    %v434 = vadd.f32 %v430, %v433
    %vm435 = vweird.f32 %v388
    %vm436 = vweird.f32 %v430
    %vm437 = vmor %vm435, %vm436
    %v438 = vsel %vm437, %v430, %v434
    %v439 = vand.u32 2147483647, %v388
    %vm440 = vcmp.eq.f32.partialorder %v439, 8.507059e+37
    %v441 = vand.u32 %v388, 2147483648
    %v442 = vor.u32 1.1754944e-38, %v441
    %v443 = vsel %vm440, %v442, %v438
    %v444 = vmul.f32 %v408, %v443
    %v445 = vrcp.pop %v391
    %v446 = vmul.f32 %v391, %v445
    %v447 = vsub.f32 1.0, %v446
    %v448 = vmul.f32 %v445, %v447
    %v449 = vadd.f32 %v445, %v448
    %vm450 = vweird.f32 %v391
    %vm451 = vweird.f32 %v445
    %vm452 = vmor %vm450, %vm451
    %v453 = vsel %vm452, %v445, %v449
    %v454 = vand.u32 2147483647, %v391
    %vm455 = vcmp.eq.f32.partialorder %v454, 8.507059e+37
    %v456 = vand.u32 %v391, 2147483648
    %v457 = vor.u32 1.1754944e-38, %v456
    %v458 = vsel %vm455, %v457, %v453
    %v459 = vmul.f32 %v409, %v458
    %v460 = vrcp.pop %v394
    %v461 = vmul.f32 %v394, %v460
    %v462 = vsub.f32 1.0, %v461
    %v463 = vmul.f32 %v460, %v462
    %v464 = vadd.f32 %v460, %v463
    %vm465 = vweird.f32 %v394
    %vm466 = vweird.f32 %v460
    %vm467 = vmor %vm465, %vm466
    %v468 = vsel %vm467, %v460, %v464
    %v469 = vand.u32 2147483647, %v394
    %vm470 = vcmp.eq.f32.partialorder %v469, 8.507059e+37
    %v471 = vand.u32 %v394, 2147483648
    %v472 = vor.u32 1.1754944e-38, %v471
    %v473 = vsel %vm470, %v472, %v468
    %v474 = vmul.f32 %v410, %v473
    %v475 = vrcp.pop %v397
    %v476 = vmul.f32 %v397, %v475
    %v477 = vsub.f32 1.0, %v476
    %v478 = vmul.f32 %v475, %v477
    %v479 = vadd.f32 %v475, %v478
    %vm480 = vweird.f32 %v397
    %vm481 = vweird.f32 %v475
    %vm482 = vmor %vm480, %vm481
    %v483 = vsel %vm482, %v475, %v479
    %v484 = vand.u32 2147483647, %v397
    %vm485 = vcmp.eq.f32.partialorder %v484, 8.507059e+37
    %v486 = vand.u32 %v397, 2147483648
    %v487 = vor.u32 1.1754944e-38, %v486
    %v488 = vsel %vm485, %v487, %v483
    %v489 = vmul.f32 %v411, %v488
    %v490 = vrcp.pop %v400
    %v491 = vmul.f32 %v400, %v490
    %v492 = vsub.f32 1.0, %v491
    %v493 = vmul.f32 %v490, %v492
    %v494 = vadd.f32 %v490, %v493
    %vm495 = vweird.f32 %v400
    %vm496 = vweird.f32 %v490
    %vm497 = vmor %vm495, %vm496
    %v498 = vsel %vm497, %v490, %v494
    %v499 = vand.u32 2147483647, %v400
    %vm500 = vcmp.eq.f32.partialorder %v499, 8.507059e+37
    %v501 = vand.u32 %v400, 2147483648
    %v502 = vor.u32 1.1754944e-38, %v501
    %v503 = vsel %vm500, %v502, %v498
    %v504 = vmul.f32 %v412, %v503
    %v505 = vrcp.pop %v403
    %v506 = vmul.f32 %v403, %v505
    %v507 = vsub.f32 1.0, %v506
    %v508 = vmul.f32 %v505, %v507
    %v509 = vadd.f32 %v505, %v508
    %vm510 = vweird.f32 %v403
    %vm511 = vweird.f32 %v505
    %vm512 = vmor %vm510, %vm511
    %v513 = vsel %vm512, %v505, %v509
    %v514 = vand.u32 2147483647, %v403
    %vm515 = vcmp.eq.f32.partialorder %v514, 8.507059e+37
    %v516 = vand.u32 %v403, 2147483648
    %v517 = vor.u32 1.1754944e-38, %v516
    %v518 = vsel %vm515, %v517, %v513
    %v519 = vmul.f32 %v413, %v518
    %v520 = vrcp.pop %v406
    %v521 = vmul.f32 %v406, %v520
    %v522 = vsub.f32 1.0, %v521
    %v523 = vmul.f32 %v520, %v522
    %v524 = vadd.f32 %v520, %v523
    %vm525 = vweird.f32 %v406
    %vm526 = vweird.f32 %v520
    %vm527 = vmor %vm525, %vm526
    %v528 = vsel %vm527, %v520, %v524
    %v529 = vand.u32 2147483647, %v406
    %vm530 = vcmp.eq.f32.partialorder %v529, 8.507059e+37
    %v531 = vand.u32 %v406, 2147483648
    %v532 = vor.u32 1.1754944e-38, %v531
    %v533 = vsel %vm530, %v532, %v528
    %v534 = vmul.f32 %v414, %v533
    %536 = vset.pattern.permute.xlu0 0
    %537 = vperm.xlu0 %536, %v429
    %v538 = vpop.permute.xlu0 %537
    %541 = vset.pattern.permute.xlu0 0
    %542 = vperm.xlu0 %541, %v444
    %v543 = vpop.permute.xlu0 %542
    %546 = vset.pattern.permute.xlu0 0
    %547 = vperm.xlu0 %546, %v459
    %v548 = vpop.permute.xlu0 %547
    %551 = vset.pattern.permute.xlu0 0
    %552 = vperm.xlu0 %551, %v474
    %v553 = vpop.permute.xlu0 %552
    %556 = vset.pattern.permute.xlu0 0
    %557 = vperm.xlu0 %556, %v489
    %v558 = vpop.permute.xlu0 %557
    %561 = vset.pattern.permute.xlu0 0
    %562 = vperm.xlu0 %561, %v504
    %v563 = vpop.permute.xlu0 %562
    %566 = vset.pattern.permute.xlu0 0
    %567 = vperm.xlu0 %566, %v519
    %v568 = vpop.permute.xlu0 %567
    %571 = vset.pattern.permute.xlu0 0
    %572 = vperm.xlu0 %571, %v534
    %v573 = vpop.permute.xlu0 %572
    %v575 = vmul.f32 %v368, %v538
    %v576 = vmul.f32 %v370, %v543
    %v577 = vmul.f32 %v372, %v548
    %v578 = vmul.f32 %v374, %v553
    %v579 = vmul.f32 %v376, %v558
    %v580 = vmul.f32 %v378, %v563
    %v581 = vmul.f32 %v380, %v568
    %v582 = vmul.f32 %v382, %v573
    %v583 = vsel %vm334, %v575, 0.0
    %v584 = vsel %vm334, %v576, 0.0
    %v585 = vadd.f32 %v583, %v584
    %v586 = vsel %vm334, %v577, 0.0
    %v587 = vadd.f32 %v585, %v586
    %v588 = vsel %vm334, %v578, 0.0
    %v589 = vadd.f32 %v587, %v588
    %v590 = vsel %vm334, %v579, 0.0
    %v591 = vadd.f32 %v589, %v590
    %v592 = vsel %vm334, %v580, 0.0
    %v593 = vadd.f32 %v591, %v592
    %v594 = vsel %vm334, %v581, 0.0
    %v595 = vadd.f32 %v593, %v594
    %v596 = vsel %vm334, %v582, 0.0
    %v597 = vadd.f32 %v595, %v596
    %v598 = vrot.slane %v597, 4
    %v599 = vadd.f32 %v597, %v598
    %v600 = vrot.slane %v599, 2
    %v601 = vadd.f32 %v599, %v600
    %v602 = vrot.slane %v601, 1
    %v603 = vadd.f32 %v601, %v602
    %v604 = vld [vmem:[#allocation5] sm:$0xff]
    %v605 = vmul.f32 %v604, %v603
    %v606 = vpack.c.bf16 %v605, %v605
    %v612 = vsel %vm334, %v606, 0
    %614 = vmatpush.bf16.msra.mxu0 0
    %615 = vmatpush.bf16.msra.mxu0 0
    %616 = vmatpush.bf16.msra.mxu0 0
    %617 = vmatpush.bf16.msra.mxu0 0
    %618 = vmatpush.bf16.msra.mxu0 %v181
    %619 = vmatpush.bf16.msra.mxu0 %v180
    %620 = vmatpush.bf16.msra.mxu0 %v179
    %621 = vmatpush.bf16.msra.mxu0 %v178
    %622 = vmatmul.bf16.gmra.mxu0 %v612
    %v623 = vpop.f32.mrf.mxu0
    %v624 = vadd.f32 0.0, %v623
    %v625 = vpop.f32.mrf.mxu0
    %626 = vdwg.mxu0
    %v627 = vpack.c.bf16 %v624, %v624
    %v628 = vld [vmem:[#allocation8] sm:$0xf]
    %v629 = vld [vmem:[#allocation8 + $0x4] sm:$0xf]
    %v630 = vld [vmem:[#allocation8 + $0x8] sm:$0xf]
    %v631 = vld [vmem:[#allocation8 + $0xc] sm:$0xf]
    %v632 = vld [vmem:[%s8] sm:$0x1]
    %v634 = vperm.slane %v632, 0
    %v640 = vunpack.c.l.b16 %v628
    %v641 = vunpack.c.l.b16 %v629
    %v642 = vunpack.c.l.b16 %v630
    %v643 = vunpack.c.l.b16 %v631
    %v644 = vpack.c.b16 %v641, %v640
    %v645 = vpack.c.b16 %v643, %v642
    %v649 = vsel %vm202, %v627, 0
    %651 = vmatpush.bf16.msra.mxu0 0
    %652 = vmatpush.bf16.msra.mxu0 0
    %653 = vmatpush.bf16.msra.mxu0 0
    %654 = vmatpush.bf16.msra.mxu0 0
    %655 = vmatpush.bf16.msra.mxu0 0
    %656 = vmatpush.bf16.msra.mxu0 0
    %657 = vmatpush.bf16.msra.mxu0 %v645
    %658 = vmatpush.bf16.msra.mxu0 %v644
    %659 = vmatmul.bf16.gmra.mxu0 %v649
    %v660 = vpop.f32.mrf.mxu0
    %v661 = vadd.f32 %v634, %v660
    %v662 = vpop.f32.mrf.mxu0
    %663 = vdwg.mxu0
    %v664 = vsel %vm202, %v661, 0.0
    %665 = vadd.xlane.f32.xlu0 %v664
    %v666 = vpop.xlane.xlu0 %665
    %v667 = vrcp.pop 32.0
    %v668 = vmul.f32 32.0, %v667
    %v669 = vsub.f32 1.0, %v668
    %v670 = vmul.f32 %v667, %v669
    %v671 = vadd.f32 %v667, %v670
    %vm672 = vweird.f32 %v667
    %v673 = vsel %vm672, %v667, %v671
    %v674 = vmul.f32 %v666, %v673
    %v675 = vsub.f32 %v661, %v674
    %v676 = vmul.f32 %v675, %v675
    %v677 = vsel %vm202, %v676, 0.0
    %678 = vadd.xlane.f32.xlu0 %v677
    %v679 = vpop.xlane.xlu0 %678
    %v680 = vmul.f32 %v679, %v673
    %v681 = vadd.f32 %v680, 1e-05
    %v682 = vrsqrt.pop %v681
    %v683 = vmul.f32 %v682, %v681
    %v684 = vmul.f32 %v683, %v682
    %v685 = vmul.f32 0.5, %v684
    %v686 = vsub.f32 1.5, %v685
    %v687 = vmul.f32 %v682, %v686
    %vm688 = vweird.f32 %v681
    %vm689 = vweird.f32 %v682
    %vm690 = vmor %vm688, %vm689
    %v691 = vsel %vm690, %v682, %v687
    %v692 = vmul.f32 %v675, %v691
    %v693 = vld [vmem:[%s9] sm:$0x1]
    %v695 = vperm.slane %v693, 0
    %v697 = vmul.f32 %v692, %v695
    %v698 = vld [vmem:[%s10] sm:$0x1]
    %v700 = vperm.slane %v698, 0
    %v702 = vadd.f32 %v697, %v700
    %v703 = vpack.c.bf16 %v702, %v702
    %v704 = vld [vmem:[#allocation10] sm:$0xf]
    %v705 = vld [vmem:[#allocation10 + $0x4] sm:$0xf]
    %v706 = vld [vmem:[#allocation10 + $0x8] sm:$0xf]
    %v707 = vld [vmem:[#allocation10 + $0xc] sm:$0xf]
    %v708 = vld [vmem:[%s12] sm:$0x1]
    %v710 = vperm.slane %v708, 0
    %v716 = vunpack.c.l.b16 %v704
    %v717 = vunpack.c.l.b16 %v705
    %v718 = vunpack.c.l.b16 %v706
    %v719 = vunpack.c.l.b16 %v707
    %v720 = vpack.c.b16 %v717, %v716
    %v721 = vpack.c.b16 %v719, %v718
    %v725 = vsel %vm202, %v703, 0
    %727 = vmatpush.bf16.msra.mxu0 0
    %728 = vmatpush.bf16.msra.mxu0 0
    %729 = vmatpush.bf16.msra.mxu0 0
    %730 = vmatpush.bf16.msra.mxu0 0
    %731 = vmatpush.bf16.msra.mxu0 0
    %732 = vmatpush.bf16.msra.mxu0 0
    %733 = vmatpush.bf16.msra.mxu0 %v721
    %734 = vmatpush.bf16.msra.mxu0 %v720
    %735 = vmatmul.bf16.gmra.mxu0 %v725
    %v736 = vpop.f32.mrf.mxu0
    %v737 = vadd.f32 %v710, %v736
    %v738 = vpop.f32.mrf.mxu0
    %739 = vdwg.mxu0
    %v740 = vmax.f32 %v737, 0.0
    %v741 = vpack.c.bf16 %v740, %v740
    %v742 = vld [vmem:[#allocation11] sm:$0xf]
    %v743 = vld [vmem:[#allocation11 + $0x4] sm:$0xf]
    %v744 = vld [vmem:[#allocation11 + $0x8] sm:$0xf]
    %v745 = vld [vmem:[#allocation11 + $0xc] sm:$0xf]
    %v746 = vld [vmem:[#allocation11 + $0x10] sm:$0xf]
    %v747 = vld [vmem:[#allocation11 + $0x14] sm:$0xf]
    %v748 = vld [vmem:[#allocation11 + $0x18] sm:$0xf]
    %v749 = vld [vmem:[#allocation11 + $0x1c] sm:$0xf]
    %v750 = vld [vmem:[%s14] sm:$0x1]
    %v752 = vperm.slane %v750, 0
    %v762 = vunpack.c.l.b16 %v742
    %v763 = vunpack.c.l.b16 %v743
    %v764 = vunpack.c.l.b16 %v744
    %v765 = vunpack.c.l.b16 %v745
    %v766 = vunpack.c.l.b16 %v746
    %v767 = vunpack.c.l.b16 %v747
    %v768 = vunpack.c.l.b16 %v748
    %v769 = vunpack.c.l.b16 %v749
    %v770 = vpack.c.b16 %v763, %v762
    %v771 = vpack.c.b16 %v765, %v764
    %v772 = vpack.c.b16 %v767, %v766
    %v773 = vpack.c.b16 %v769, %v768
    %v779 = vsel %vm334, %v741, 0
    %781 = vmatpush.bf16.msra.mxu0 0
    %782 = vmatpush.bf16.msra.mxu0 0
    %783 = vmatpush.bf16.msra.mxu0 0
    %784 = vmatpush.bf16.msra.mxu0 0
    %785 = vmatpush.bf16.msra.mxu0 %v773
    %786 = vmatpush.bf16.msra.mxu0 %v772
    %787 = vmatpush.bf16.msra.mxu0 %v771
    %788 = vmatpush.bf16.msra.mxu0 %v770
    %789 = vmatmul.bf16.gmra.mxu0 %v779
    %v790 = vpop.f32.mrf.mxu0
    %v791 = vadd.f32 %v752, %v790
    %v792 = vpop.f32.mrf.mxu0
    %793 = vdwg.mxu0
    %794 = vst [vmem:[#allocation13] sm:$0xff] %v791
    // Predicated region
    $region86: #{tpu_custom_call.1} parent=1 // pred_check
      _
    $region87: #{tpu_custom_call.1} parent=1 // pred_check_branch
      %796 = sbr.rel (0) target = $region89
    $region88: #{tpu_custom_call.1} parent=1 // pred_region
      %798 = vsyncadd [#allocation4], 0
      %s800 = sshll.u32 [#allocation13], 4
      %s801 = int_to_ptr.vmem [resolvable:$true] %s800
      %s802 = sshll.u32 %s15, 4
      %s803 = int_to_ptr.hbm [resolvable:$true] %s802
      %805 = dma.vmem_to_hbm [thread:$0]  %s801, 128, %s803, [#allocation4]
    $region89: #{tpu_custom_call.1} parent=1 // pred_fallthru
      _
    // Predicated region
    $region90: #{tpu_custom_call.1} parent=1 // pred_check
      _
    $region91: #{tpu_custom_call.1} parent=1 // pred_check_branch
      %807 = sbr.rel (0) target = $region93
    $region92: #{tpu_custom_call.1} parent=1 // pred_region
      %809 = dma.done [#allocation4], 128
    $region93: #{tpu_custom_call.1} parent=1 // pred_fallthru
      _
    %810 = vsyncpa [#allocation3], 1
    %811 = vsyncpa [#allocation6], 1
    %812 = vsyncpa [#allocation9], 1
    %813 = vsyncpa [#allocation12], 1
    %814 = vsyncpa [#allocation4], 1

</llo_original>
